<compile_context>
chip_gen: v5e
topology: v5e:2x2
jax: 0.10.0
libtpu: 0.0.40
codegen_flags: <defaults>
</compile_context>

<pallas_src>
import functools

import jax
import jax.numpy as jnp
from jax import lax
from jax.experimental import pallas as pl
from jax.experimental.pallas import tpu as pltpu


def lstm_classifier_kernel(n_layers, hidden_size, x_temp_ref, x_static_ref, *rest):
    """rest = [ (w_ih_t, w_hh_t, bias) * n_layers,        # LSTM weights, gate order (i,f,o,g),
                                                           #   i/f/o columns pre-scaled by 0.5
               W1h, W1s, b1, W2, b2,                       # fc head weights
               out_ref,                                    # output (BB, 1)
               buf_ref,                                    # scratch (T, BB, H): inter-layer h_t
               gates_ref ]                                 # scratch (T, BB, 4H): hoisted x@Wih+b
    """
    idx = 0
    layer_params = []
    for _ in range(n_layers):
        layer_params.append((rest[idx], rest[idx + 1], rest[idx + 2]))
        idx += 3
    w1h_ref, w1s_ref, b1_ref, w2_ref, b2_ref = rest[idx:idx + 5]
    out_ref = rest[idx + 5]
    buf_ref = rest[idx + 6]
    gates_ref = rest[idx + 7]

    T = x_temp_ref.shape[0]
    BB = x_temp_ref.shape[1]
    H = hidden_size
    unroll = True if T <= 16 else 4   # swept per perf review (was 2)

    h_last = jnp.zeros((BB, H), jnp.float32)
    for l, (wih_ref, whh_ref, b_ref) in enumerate(layer_params):
        wih = wih_ref[...]       # (in, 4H), matmul_dtype
        whh = whh_ref[...]       # (H, 4H), recurrent_dtype (bf16 by default)
        bias = b_ref[...]        # (1, 4H), f32  (= b_ih + b_hh, i/f/o pre-scaled)

        # ---- hoisted input projection: one large, MXU-friendly matmul, off the
        #      recurrence; bias folded in here (single broadcast per layer).
        if l == 0:
            x2d = x_temp_ref[...].reshape(T * BB, x_temp_ref.shape[2])
        else:
            x2d = buf_ref[...].reshape(T * BB, H)
        x2d = x2d.astype(wih.dtype)
        gates_in = jnp.dot(x2d, wih, preferred_element_type=jnp.float32) + bias
        gates_ref[...] = gates_in.reshape(T, BB, 4 * H)

        is_last = (l == n_layers - 1)

        # TODO(synk): hold Whh resident in MXU weight registers across the whole time
        # loop via pltpu.matmul_push_rhs / matmul_acc_lhs / matmul_pop to drop the
        # per-step weight re-push from the serial chain; kept as jnp.dot here for
        # portability across v5e/v6e/v7x.
        def step(t, carry, whh=whh, is_last=is_last):
            h, c = carry
            # Only the small recurrent matmul sits on the serial critical path.
            # bf16 operands (one cheap cast of h), f32 accumulation.
            gates = gates_ref[t] + jnp.dot(h.astype(whh.dtype), whh,
                                           preferred_element_type=jnp.float32)
            # Single EUP pass over the full lane-aligned (BB, 4H) slab.
            # i/f/o columns were pre-scaled by 0.5, so sigmoid(x) = 0.5*(tanh(x/2)+1).
            t_all = jnp.tanh(gates)
            sig = 0.5 * (t_all[:, :3 * H] + 1.0)     # VALU (has slack)
            i_g = sig[:, :H]
            f_g = sig[:, H:2 * H]
            o_g = sig[:, 2 * H:]
            g_g = t_all[:, 3 * H:]
            c_new = f_g * c + i_g * g_g
            h_new = o_g * jnp.tanh(c_new)
            if not is_last:
                # TODO(synk): for H < 128 this is a lane-masked store; lay the
                # inter-layer buffer out lane-dense (fold batch into lanes) or pad H
                # to a 128 multiple to make it an unmasked vst.
                buf_ref[t] = h_new
            return (h_new, c_new)

        h0 = jnp.zeros((BB, H), jnp.float32)     # matches torch.zeros h0/c0
        c0 = jnp.zeros((BB, H), jnp.float32)
        h_last, _ = lax.fori_loop(0, T, step, (h0, c0), unroll=unroll)

    # FC head: cat([h_last, x_static], 1) @ W1^T + b1 -> ReLU -> @ W2^T + b2
    # (concat realized as split matmul: h @ W1h + s @ W1s)
    # TODO(synk): nn.Dropout is inference-mode identity here (no RNG masking).
    x_static = x_static_ref[...].astype(jnp.float32)
    z = (jnp.dot(h_last, w1h_ref[...], preferred_element_type=jnp.float32)
         + jnp.dot(x_static, w1s_ref[...], preferred_element_type=jnp.float32)
         + b1_ref[...])
    z = jnp.maximum(z, 0.0)
    out_ref[...] = jnp.dot(z, w2_ref[...], preferred_element_type=jnp.float32) + b2_ref[...]


def init_params(key, lstm_input_size, lstm_hidden_size, lstm_n_layers, n_static_feats):
    """Deterministic parameter init following PyTorch default shapes."""
    H = lstm_hidden_size
    keys = jax.random.split(key, 4 * lstm_n_layers + 4)
    k = 1.0 / jnp.sqrt(H)
    layers = []
    idx = 0
    for l in range(lstm_n_layers):
        in_size = lstm_input_size if l == 0 else H
        w_ih = jax.random.uniform(keys[idx], (4 * H, in_size), minval=-k, maxval=k); idx += 1
        w_hh = jax.random.uniform(keys[idx], (4 * H, H), minval=-k, maxval=k); idx += 1
        b_ih = jax.random.uniform(keys[idx], (4 * H,), minval=-k, maxval=k); idx += 1
        b_hh = jax.random.uniform(keys[idx], (4 * H,), minval=-k, maxval=k); idx += 1
        layers.append((w_ih, w_hh, b_ih, b_hh))
    kf1 = 1.0 / jnp.sqrt(H + n_static_feats)
    W1 = jax.random.uniform(keys[idx], (128, H + n_static_feats), minval=-kf1, maxval=kf1); idx += 1
    b1 = jax.random.uniform(keys[idx], (128,), minval=-kf1, maxval=kf1); idx += 1
    kf2 = 1.0 / jnp.sqrt(128.0)
    W2 = jax.random.uniform(keys[idx], (1, 128), minval=-kf2, maxval=kf2); idx += 1
    b2 = jax.random.uniform(keys[idx], (1,), minval=-kf2, maxval=kf2); idx += 1
    return {"hidden_size": H, "layers": layers, "fc": (W1, b1, W2, b2)}


def _reorder_and_scale_gates(w):
    """PyTorch gate order (i, f, g, o) -> (i, f, o, g) along axis 0, with the sigmoid
    gates (i, f, o) pre-scaled by 0.5 so the kernel can use sigmoid(x)=0.5*(tanh(x/2)+1)
    with a single tanh over the whole gate slab."""
    i_g, f_g, g_g, o_g = jnp.split(w, 4, axis=0)
    return jnp.concatenate([0.5 * i_g, 0.5 * f_g, 0.5 * o_g, g_g], axis=0)


def lstm_classifier_forward(x_temp, x_static, params, *,
                            matmul_dtype=jnp.float32,
                            recurrent_dtype=jnp.bfloat16,
                            interpret=False):
    """x_temp: (B, T, I) batch-first; x_static: (B, S). Returns (B, 1) float32.

    matmul_dtype   : dtype of the hoisted input-projection weights (off critical path).
    recurrent_dtype: dtype of the recurrent Whh (ON the serial critical path); bf16
                     default per perf review (f32 accumulation is kept either way).
    """
    B, T, I = x_temp.shape
    S = x_static.shape[1]
    H = params["hidden_size"]
    layers = params["layers"]
    n_layers = len(layers)

    # Pad batch to a sublane multiple (8); cap blocks at 64 rows so any batch > 64
    # yields >= 2 grid blocks for the "parallel" axis (lets v7x's 2 TensorCores split
    # the batch) and keeps vreg pressure in the serial loop low for large H.
    if B <= 64:
        BB = max(8, ((B + 7) // 8) * 8)
        B_pad = BB
    else:
        BB = 64
        B_pad = ((B + BB - 1) // BB) * BB
    pad = B_pad - B
    x_temp_p = jnp.pad(x_temp.astype(jnp.float32), ((0, pad), (0, 0), (0, 0)))
    x_static_p = jnp.pad(x_static.astype(jnp.float32), ((0, pad), (0, 0)))

    # TODO(synk): for very long T, block the hoisted projection / x_temp over time
    # chunks (time-axis BlockSpec or pltpu.emit_pipeline writing gates_ref in chunks)
    # so VMEM residency is ~2 chunks instead of the whole sequence.
    x_temp_tm = jnp.transpose(x_temp_p, (1, 0, 2))  # (T, B_pad, I), f32

    flat_inputs = [x_temp_tm, x_static_p]
    in_specs = [
        pl.BlockSpec((T, BB, I), lambda b: (0, b, 0)),
        pl.BlockSpec((BB, S), lambda b: (b, 0)),
    ]

    def full_spec(shape):
        # TODO(synk): weights use a constant index_map and are never re-fetched;
        # pipeline_mode=pl.Buffered(1) would halve their VMEM footprint if needed.
        return pl.BlockSpec(shape, lambda b: (0, 0))

    for (w_ih, w_hh, b_ih, b_hh) in layers:
        wih_t = _reorder_and_scale_gates(jnp.asarray(w_ih, jnp.float32)).T.astype(matmul_dtype)     # (in, 4H)
        whh_t = _reorder_and_scale_gates(jnp.asarray(w_hh, jnp.float32)).T.astype(recurrent_dtype)  # (H, 4H)
        bias = _reorder_and_scale_gates(jnp.asarray(b_ih + b_hh, jnp.float32))[None, :]             # (1, 4H)
        for arr in (wih_t, whh_t, bias):
            flat_inputs.append(arr)
            in_specs.append(full_spec(arr.shape))

    W1, b1, W2, b2 = params["fc"]
    for arr in (jnp.asarray(W1[:, :H].T, jnp.float32),   # (H, 128)
                jnp.asarray(W1[:, H:].T, jnp.float32),   # (S, 128)
                jnp.asarray(b1[None, :], jnp.float32),   # (1, 128)
                jnp.asarray(W2.T, jnp.float32),          # (128, 1)
                jnp.asarray(b2[None, :], jnp.float32)):  # (1, 1)
        flat_inputs.append(arr)
        in_specs.append(full_spec(arr.shape))

    # Explicit VMEM budget: block-resident inputs (double-buffered), all weights
    # (double-buffered), output block, plus the two full-T scratch buffers. Floored at
    # 32 MiB (raises v5e's 16 MiB default) and capped at 64 MiB (v7x physical VMEM).
    weight_bytes = sum(int(a.size) * a.dtype.itemsize for a in flat_inputs[2:])
    block_in_bytes = (T * BB * I + BB * S) * 4
    out_bytes = BB * 1 * 4
    scratch_bytes = T * BB * (H + 4 * H) * 4
    est = 2 * (block_in_bytes + weight_bytes + out_bytes) + scratch_bytes
    vmem_limit_bytes = int(min(max(2 * est, 32 * 1024 * 1024), 64 * 1024 * 1024))

    kernel = functools.partial(lstm_classifier_kernel, n_layers, H)
    out = pl.pallas_call(
        kernel,
        grid=(B_pad // BB,),
        out_shape=jax.ShapeDtypeStruct((B_pad, 1), jnp.float32),
        in_specs=in_specs,
        out_specs=pl.BlockSpec((BB, 1), lambda b: (b, 0)),
        scratch_shapes=[
            pltpu.VMEM((T, BB, H), jnp.float32),        # inter-layer h_t sequence
            pltpu.VMEM((T, BB, 4 * H), jnp.float32),    # hoisted input-projection gates
        ],
        compiler_params=pltpu.CompilerParams(
            dimension_semantics=("parallel",),
            vmem_limit_bytes=vmem_limit_bytes,
        ),
        interpret=interpret,
    )(*flat_inputs)
    return out[:B]


def reference_forward(x_temp, x_static, params):
    """Pure-JAX reference of the same forward pass (eval mode, standard gate math)."""
    H = params["hidden_size"]
    B, T, _ = x_temp.shape
    seq = x_temp.astype(jnp.float32)
    h_last = None
    for (w_ih, w_hh, b_ih, b_hh) in params["layers"]:
        h = jnp.zeros((B, H), jnp.float32)
        c = jnp.zeros((B, H), jnp.float32)
        outs = []
        for t in range(T):
            g = seq[:, t, :] @ w_ih.T + h @ w_hh.T + b_ih + b_hh
            i_g = jax.nn.sigmoid(g[:, 0:H])
            f_g = jax.nn.sigmoid(g[:, H:2 * H])
            g_g = jnp.tanh(g[:, 2 * H:3 * H])
            o_g = jax.nn.sigmoid(g[:, 3 * H:4 * H])
            c = f_g * c + i_g * g_g
            h = o_g * jnp.tanh(c)
            outs.append(h)
        seq = jnp.stack(outs, axis=1)
        h_last = h
    W1, b1, W2, b2 = params["fc"]
    x = jnp.concatenate([h_last, x_static.astype(jnp.float32)], axis=1)
    x = jnp.maximum(x @ W1.T + b1, 0.0)
    return x @ W2.T + b2


if __name__ == "__main__":
    B, T = 2, 8
    lstm_input_size = 16
    lstm_hidden_size = 32
    lstm_n_layers = 2
    n_static_feats = 8

    key = jax.random.PRNGKey(0)
    k_param, k_temp, k_static = jax.random.split(key, 3)
    params = init_params(k_param, lstm_input_size, lstm_hidden_size,
                         lstm_n_layers, n_static_feats)
    x_temp = jax.random.normal(k_temp, (B, T, lstm_input_size), dtype=jnp.float32)
    x_static = jax.random.normal(k_static, (B, n_static_feats), dtype=jnp.float32)

    ref = reference_forward(x_temp, x_static, params)

    # (a) all-f32 path — tight check (validates gate reorder + 0.5 pre-scale trick)
    out_f32 = lstm_classifier_forward(x_temp, x_static, params,
                                      matmul_dtype=jnp.float32,
                                      recurrent_dtype=jnp.float32)
    out_f32 = jax.block_until_ready(out_f32)
    assert out_f32.shape == (B, 1)
    assert jnp.allclose(out_f32, ref, atol=1e-3, rtol=1e-3), (out_f32, ref)

    # (b) default path — bf16 recurrent Whh on the critical path (f32 accumulation)
    out = jax.block_until_ready(lstm_classifier_forward(x_temp, x_static, params))
    assert out.shape == (B, 1)
    assert jnp.allclose(out, ref, atol=5e-2, rtol=5e-2), (out, ref)

    # (c) fully bf16 matmul weights — loosest numeric check
    out_bf16 = jax.block_until_ready(
        lstm_classifier_forward(x_temp, x_static, params,
                                matmul_dtype=jnp.bfloat16,
                                recurrent_dtype=jnp.bfloat16))
    assert out_bf16.shape == (B, 1)
    assert jnp.allclose(out_bf16, ref, atol=1e-1, rtol=1e-1), (out_bf16, ref)

    print("KERNEL_OK")
</pallas_src>

<mosaic_0001>
module attributes {stable_mosaic.version = 11 : i64} {
  func.func @lstm_classifier_kernel(%arg0: i32, %arg1: memref<8x8x16xf32, #tpu.memory_space<vmem>>, %arg2: memref<8x8xf32, #tpu.memory_space<vmem>>, %arg3: memref<16x128xf32, #tpu.memory_space<vmem>>, %arg4: memref<32x128xf32, #tpu.memory_space<vmem>>, %arg5: memref<1x128xf32, #tpu.memory_space<vmem>>, %arg6: memref<32x128xf32, #tpu.memory_space<vmem>>, %arg7: memref<32x128xf32, #tpu.memory_space<vmem>>, %arg8: memref<1x128xf32, #tpu.memory_space<vmem>>, %arg9: memref<32x128xf32, #tpu.memory_space<vmem>>, %arg10: memref<8x128xf32, #tpu.memory_space<vmem>>, %arg11: memref<1x128xf32, #tpu.memory_space<vmem>>, %arg12: memref<128x1xf32, #tpu.memory_space<vmem>>, %arg13: memref<1x1xf32, #tpu.memory_space<vmem>>, %arg14: memref<8x1xf32, #tpu.memory_space<vmem>>, %arg15: memref<8x8x32xf32, #tpu.memory_space<vmem>>, %arg16: memref<8x8x128xf32, #tpu.memory_space<vmem>>) attributes {dimension_semantics = [#tpu.dimension_semantics<parallel>], iteration_bounds = array<i64: 1>, scalar_prefetch = 0 : i64, scratch_operands = 2 : i64, tpu.core_type = #tpu.core_type<tc>, window_params = [{transform_indices = @transform_0, window_bounds = array<i64: 8, 8, 16>}, {transform_indices = @transform_1, window_bounds = array<i64: 8, 8>}, {pipeline_mode = #tpu.pipeline_mode<synchronous>, transform_indices = @transform_2, window_bounds = array<i64: 16, 128>}, {pipeline_mode = #tpu.pipeline_mode<synchronous>, transform_indices = @transform_3, window_bounds = array<i64: 32, 128>}, {pipeline_mode = #tpu.pipeline_mode<synchronous>, transform_indices = @transform_4, window_bounds = array<i64: 1, 128>}, {pipeline_mode = #tpu.pipeline_mode<synchronous>, transform_indices = @transform_5, window_bounds = array<i64: 32, 128>}, {pipeline_mode = #tpu.pipeline_mode<synchronous>, transform_indices = @transform_6, window_bounds = array<i64: 32, 128>}, {pipeline_mode = #tpu.pipeline_mode<synchronous>, transform_indices = @transform_7, window_bounds = array<i64: 1, 128>}, {pipeline_mode = #tpu.pipeline_mode<synchronous>, transform_indices = @transform_8, window_bounds = array<i64: 32, 128>}, {pipeline_mode = #tpu.pipeline_mode<synchronous>, transform_indices = @transform_9, window_bounds = array<i64: 8, 128>}, {pipeline_mode = #tpu.pipeline_mode<synchronous>, transform_indices = @transform_10, window_bounds = array<i64: 1, 128>}, {pipeline_mode = #tpu.pipeline_mode<synchronous>, transform_indices = @transform_11, window_bounds = array<i64: 128, 1>}, {pipeline_mode = #tpu.pipeline_mode<synchronous>, transform_indices = @transform_12, window_bounds = array<i64: 1, 1>}, {transform_indices = @transform_13, window_bounds = array<i64: 8, 1>}]} {
    %c0 = arith.constant 0 : index
    %c0_0 = arith.constant 0 : index
    %0 = vector.load %arg3[%c0, %c0_0] : memref<16x128xf32, #tpu.memory_space<vmem>>, vector<16x128xf32>
    %c0_1 = arith.constant 0 : index
    %c0_2 = arith.constant 0 : index
    %1 = vector.load %arg4[%c0_1, %c0_2] : memref<32x128xf32, #tpu.memory_space<vmem>>, vector<32x128xf32>
    %c0_3 = arith.constant 0 : index
    %c0_4 = arith.constant 0 : index
    %2 = vector.load %arg5[%c0_3, %c0_4] : memref<1x128xf32, #tpu.memory_space<vmem>>, vector<1x128xf32>
    %c0_5 = arith.constant 0 : index
    %c0_6 = arith.constant 0 : index
    %c0_7 = arith.constant 0 : index
    %3 = vector.load %arg1[%c0_5, %c0_6, %c0_7] : memref<8x8x16xf32, #tpu.memory_space<vmem>>, vector<8x8x16xf32>
    %4 = vector.shape_cast %3 : vector<8x8x16xf32> to vector<64x16xf32>
    %cst = arith.constant dense<0.000000e+00> : vector<64x128xf32>
    %5 = tpu.matmul %4, %0, %cst {dimension_numbers = #tpu.dot_dimension_numbers<[1], [0], [0], [1], [0, 0, 1, 1], [], []>} : vector<64x16xf32>, vector<16x128xf32>, vector<64x128xf32> -> vector<64x128xf32>
    %6 = vector.broadcast %2 : vector<1x128xf32> to vector<64x128xf32>
    %7 = arith.addf %5, %6 : vector<64x128xf32>
    %8 = vector.shape_cast %7 : vector<64x128xf32> to vector<8x8x128xf32>
    %c0_8 = arith.constant 0 : index
    %c0_9 = arith.constant 0 : index
    %c0_10 = arith.constant 0 : index
    %9 = vector.load %arg16[%c0_8, %c0_9, %c0_10] : memref<8x8x128xf32, #tpu.memory_space<vmem>>, vector<8x8x128xf32>
    tpu.vector_store %arg16[%c0_8, %c0_9, %c0_10], %8 {strides = array<i32>} : memref<8x8x128xf32, #tpu.memory_space<vmem>>, vector<8x8x128xf32>,
    %cst_11 = arith.constant 0.000000e+00 : f32
    %10 = vector.broadcast %cst_11 : f32 to vector<8x32xf32>
    %cst_12 = arith.constant 0.000000e+00 : f32
    %11 = vector.broadcast %cst_12 : f32 to vector<8x32xf32>
    %c0_i32 = arith.constant 0 : i32
    %12 = arith.index_cast %c0_i32 : i32 to index
    %c0_13 = arith.constant 0 : index
    %c0_14 = arith.constant 0 : index
    %13 = vector.load %arg16[%12, %c0_13, %c0_14] : memref<8x8x128xf32, #tpu.memory_space<vmem>>, vector<1x8x128xf32>
    %14 = vector.shape_cast %13 : vector<1x8x128xf32> to vector<8x128xf32>
    %cst_15 = arith.constant dense<0.000000e+00> : vector<8x128xf32>
    %15 = tpu.matmul %10, %1, %cst_15 {dimension_numbers = #tpu.dot_dimension_numbers<[1], [0], [0], [1], [0, 0, 1, 1], [], []>} : vector<8x32xf32>, vector<32x128xf32>, vector<8x128xf32> -> vector<8x128xf32>
    %16 = arith.addf %14, %15 : vector<8x128xf32>
    %17 = math.tanh %16 : vector<8x128xf32>
    %18 = vector.extract_strided_slice %17 {offsets = [0, 0], sizes = [8, 96], strides = [1, 1]} : vector<8x128xf32> to vector<8x96xf32>
    %cst_16 = arith.constant 1.000000e+00 : f32
    %19 = vector.broadcast %cst_16 : f32 to vector<8x96xf32>
    %20 = arith.addf %18, %19 : vector<8x96xf32>
    %cst_17 = arith.constant 5.000000e-01 : f32
    %21 = vector.broadcast %cst_17 : f32 to vector<8x96xf32>
    %22 = arith.mulf %21, %20 : vector<8x96xf32>
    %23 = vector.extract_strided_slice %22 {offsets = [0, 0], sizes = [8, 32], strides = [1, 1]} : vector<8x96xf32> to vector<8x32xf32>
    %24 = vector.extract_strided_slice %22 {offsets = [0, 32], sizes = [8, 32], strides = [1, 1]} : vector<8x96xf32> to vector<8x32xf32>
    %25 = vector.extract_strided_slice %22 {offsets = [0, 64], sizes = [8, 32], strides = [1, 1]} : vector<8x96xf32> to vector<8x32xf32>
    %26 = vector.extract_strided_slice %17 {offsets = [0, 96], sizes = [8, 32], strides = [1, 1]} : vector<8x128xf32> to vector<8x32xf32>
    %27 = arith.mulf %24, %11 : vector<8x32xf32>
    %28 = arith.mulf %23, %26 : vector<8x32xf32>
    %29 = arith.addf %27, %28 : vector<8x32xf32>
    %30 = math.tanh %29 : vector<8x32xf32>
    %31 = arith.mulf %25, %30 : vector<8x32xf32>
    %32 = arith.index_cast %c0_i32 : i32 to index
    %c0_18 = arith.constant 0 : index
    %c0_19 = arith.constant 0 : index
    %33 = vector.load %arg15[%32, %c0_18, %c0_19] : memref<8x8x32xf32, #tpu.memory_space<vmem>>, vector<1x8x32xf32>
    %34 = vector.shape_cast %33 : vector<1x8x32xf32> to vector<8x32xf32>
    %35 = vector.shape_cast %31 : vector<8x32xf32> to vector<1x8x32xf32>
    tpu.vector_store %arg15[%32, %c0_18, %c0_19], %35 {strides = array<i32>} : memref<8x8x32xf32, #tpu.memory_space<vmem>>, vector<1x8x32xf32>,
    %c1_i32 = arith.constant 1 : i32
    %36 = arith.index_cast %c1_i32 : i32 to index
    %c0_20 = arith.constant 0 : index
    %c0_21 = arith.constant 0 : index
    %37 = vector.load %arg16[%36, %c0_20, %c0_21] : memref<8x8x128xf32, #tpu.memory_space<vmem>>, vector<1x8x128xf32>
    %38 = vector.shape_cast %37 : vector<1x8x128xf32> to vector<8x128xf32>
    %cst_22 = arith.constant dense<0.000000e+00> : vector<8x128xf32>
    %39 = tpu.matmul %31, %1, %cst_22 {dimension_numbers = #tpu.dot_dimension_numbers<[1], [0], [0], [1], [0, 0, 1, 1], [], []>} : vector<8x32xf32>, vector<32x128xf32>, vector<8x128xf32> -> vector<8x128xf32>
    %40 = arith.addf %38, %39 : vector<8x128xf32>
    %41 = math.tanh %40 : vector<8x128xf32>
    %42 = vector.extract_strided_slice %41 {offsets = [0, 0], sizes = [8, 96], strides = [1, 1]} : vector<8x128xf32> to vector<8x96xf32>
    %cst_23 = arith.constant 1.000000e+00 : f32
    %43 = vector.broadcast %cst_23 : f32 to vector<8x96xf32>
    %44 = arith.addf %42, %43 : vector<8x96xf32>
    %cst_24 = arith.constant 5.000000e-01 : f32
    %45 = vector.broadcast %cst_24 : f32 to vector<8x96xf32>
    %46 = arith.mulf %45, %44 : vector<8x96xf32>
    %47 = vector.extract_strided_slice %46 {offsets = [0, 0], sizes = [8, 32], strides = [1, 1]} : vector<8x96xf32> to vector<8x32xf32>
    %48 = vector.extract_strided_slice %46 {offsets = [0, 32], sizes = [8, 32], strides = [1, 1]} : vector<8x96xf32> to vector<8x32xf32>
    %49 = vector.extract_strided_slice %46 {offsets = [0, 64], sizes = [8, 32], strides = [1, 1]} : vector<8x96xf32> to vector<8x32xf32>
    %50 = vector.extract_strided_slice %41 {offsets = [0, 96], sizes = [8, 32], strides = [1, 1]} : vector<8x128xf32> to vector<8x32xf32>
    %51 = arith.mulf %48, %29 : vector<8x32xf32>
    %52 = arith.mulf %47, %50 : vector<8x32xf32>
    %53 = arith.addf %51, %52 : vector<8x32xf32>
    %54 = math.tanh %53 : vector<8x32xf32>
    %55 = arith.mulf %49, %54 : vector<8x32xf32>
    %56 = arith.index_cast %c1_i32 : i32 to index
    %c0_25 = arith.constant 0 : index
    %c0_26 = arith.constant 0 : index
    %57 = vector.load %arg15[%56, %c0_25, %c0_26] : memref<8x8x32xf32, #tpu.memory_space<vmem>>, vector<1x8x32xf32>
    %58 = vector.shape_cast %57 : vector<1x8x32xf32> to vector<8x32xf32>
    %59 = vector.shape_cast %55 : vector<8x32xf32> to vector<1x8x32xf32>
    tpu.vector_store %arg15[%56, %c0_25, %c0_26], %59 {strides = array<i32>} : memref<8x8x32xf32, #tpu.memory_space<vmem>>, vector<1x8x32xf32>,
    %c2_i32 = arith.constant 2 : i32
    %60 = arith.index_cast %c2_i32 : i32 to index
    %c0_27 = arith.constant 0 : index
    %c0_28 = arith.constant 0 : index
    %61 = vector.load %arg16[%60, %c0_27, %c0_28] : memref<8x8x128xf32, #tpu.memory_space<vmem>>, vector<1x8x128xf32>
    %62 = vector.shape_cast %61 : vector<1x8x128xf32> to vector<8x128xf32>
    %cst_29 = arith.constant dense<0.000000e+00> : vector<8x128xf32>
    %63 = tpu.matmul %55, %1, %cst_29 {dimension_numbers = #tpu.dot_dimension_numbers<[1], [0], [0], [1], [0, 0, 1, 1], [], []>} : vector<8x32xf32>, vector<32x128xf32>, vector<8x128xf32> -> vector<8x128xf32>
    %64 = arith.addf %62, %63 : vector<8x128xf32>
    %65 = math.tanh %64 : vector<8x128xf32>
    %66 = vector.extract_strided_slice %65 {offsets = [0, 0], sizes = [8, 96], strides = [1, 1]} : vector<8x128xf32> to vector<8x96xf32>
    %cst_30 = arith.constant 1.000000e+00 : f32
    %67 = vector.broadcast %cst_30 : f32 to vector<8x96xf32>
    %68 = arith.addf %66, %67 : vector<8x96xf32>
    %cst_31 = arith.constant 5.000000e-01 : f32
    %69 = vector.broadcast %cst_31 : f32 to vector<8x96xf32>
    %70 = arith.mulf %69, %68 : vector<8x96xf32>
    %71 = vector.extract_strided_slice %70 {offsets = [0, 0], sizes = [8, 32], strides = [1, 1]} : vector<8x96xf32> to vector<8x32xf32>
    %72 = vector.extract_strided_slice %70 {offsets = [0, 32], sizes = [8, 32], strides = [1, 1]} : vector<8x96xf32> to vector<8x32xf32>
    %73 = vector.extract_strided_slice %70 {offsets = [0, 64], sizes = [8, 32], strides = [1, 1]} : vector<8x96xf32> to vector<8x32xf32>
    %74 = vector.extract_strided_slice %65 {offsets = [0, 96], sizes = [8, 32], strides = [1, 1]} : vector<8x128xf32> to vector<8x32xf32>
    %75 = arith.mulf %72, %53 : vector<8x32xf32>
    %76 = arith.mulf %71, %74 : vector<8x32xf32>
    %77 = arith.addf %75, %76 : vector<8x32xf32>
    %78 = math.tanh %77 : vector<8x32xf32>
    %79 = arith.mulf %73, %78 : vector<8x32xf32>
    %80 = arith.index_cast %c2_i32 : i32 to index
    %c0_32 = arith.constant 0 : index
    %c0_33 = arith.constant 0 : index
    %81 = vector.load %arg15[%80, %c0_32, %c0_33] : memref<8x8x32xf32, #tpu.memory_space<vmem>>, vector<1x8x32xf32>
    %82 = vector.shape_cast %81 : vector<1x8x32xf32> to vector<8x32xf32>
    %83 = vector.shape_cast %79 : vector<8x32xf32> to vector<1x8x32xf32>
    tpu.vector_store %arg15[%80, %c0_32, %c0_33], %83 {strides = array<i32>} : memref<8x8x32xf32, #tpu.memory_space<vmem>>, vector<1x8x32xf32>,
    %c3_i32 = arith.constant 3 : i32
    %84 = arith.index_cast %c3_i32 : i32 to index
    %c0_34 = arith.constant 0 : index
    %c0_35 = arith.constant 0 : index
    %85 = vector.load %arg16[%84, %c0_34, %c0_35] : memref<8x8x128xf32, #tpu.memory_space<vmem>>, vector<1x8x128xf32>
    %86 = vector.shape_cast %85 : vector<1x8x128xf32> to vector<8x128xf32>
    %cst_36 = arith.constant dense<0.000000e+00> : vector<8x128xf32>
    %87 = tpu.matmul %79, %1, %cst_36 {dimension_numbers = #tpu.dot_dimension_numbers<[1], [0], [0], [1], [0, 0, 1, 1], [], []>} : vector<8x32xf32>, vector<32x128xf32>, vector<8x128xf32> -> vector<8x128xf32>
    %88 = arith.addf %86, %87 : vector<8x128xf32>
    %89 = math.tanh %88 : vector<8x128xf32>
    %90 = vector.extract_strided_slice %89 {offsets = [0, 0], sizes = [8, 96], strides = [1, 1]} : vector<8x128xf32> to vector<8x96xf32>
    %cst_37 = arith.constant 1.000000e+00 : f32
    %91 = vector.broadcast %cst_37 : f32 to vector<8x96xf32>
    %92 = arith.addf %90, %91 : vector<8x96xf32>
    %cst_38 = arith.constant 5.000000e-01 : f32
    %93 = vector.broadcast %cst_38 : f32 to vector<8x96xf32>
    %94 = arith.mulf %93, %92 : vector<8x96xf32>
    %95 = vector.extract_strided_slice %94 {offsets = [0, 0], sizes = [8, 32], strides = [1, 1]} : vector<8x96xf32> to vector<8x32xf32>
    %96 = vector.extract_strided_slice %94 {offsets = [0, 32], sizes = [8, 32], strides = [1, 1]} : vector<8x96xf32> to vector<8x32xf32>
    %97 = vector.extract_strided_slice %94 {offsets = [0, 64], sizes = [8, 32], strides = [1, 1]} : vector<8x96xf32> to vector<8x32xf32>
    %98 = vector.extract_strided_slice %89 {offsets = [0, 96], sizes = [8, 32], strides = [1, 1]} : vector<8x128xf32> to vector<8x32xf32>
    %99 = arith.mulf %96, %77 : vector<8x32xf32>
    %100 = arith.mulf %95, %98 : vector<8x32xf32>
    %101 = arith.addf %99, %100 : vector<8x32xf32>
    %102 = math.tanh %101 : vector<8x32xf32>
    %103 = arith.mulf %97, %102 : vector<8x32xf32>
    %104 = arith.index_cast %c3_i32 : i32 to index
    %c0_39 = arith.constant 0 : index
    %c0_40 = arith.constant 0 : index
    %105 = vector.load %arg15[%104, %c0_39, %c0_40] : memref<8x8x32xf32, #tpu.memory_space<vmem>>, vector<1x8x32xf32>
    %106 = vector.shape_cast %105 : vector<1x8x32xf32> to vector<8x32xf32>
    %107 = vector.shape_cast %103 : vector<8x32xf32> to vector<1x8x32xf32>
    tpu.vector_store %arg15[%104, %c0_39, %c0_40], %107 {strides = array<i32>} : memref<8x8x32xf32, #tpu.memory_space<vmem>>, vector<1x8x32xf32>,
    %c4_i32 = arith.constant 4 : i32
    %108 = arith.index_cast %c4_i32 : i32 to index
    %c0_41 = arith.constant 0 : index
    %c0_42 = arith.constant 0 : index
    %109 = vector.load %arg16[%108, %c0_41, %c0_42] : memref<8x8x128xf32, #tpu.memory_space<vmem>>, vector<1x8x128xf32>
    %110 = vector.shape_cast %109 : vector<1x8x128xf32> to vector<8x128xf32>
    %cst_43 = arith.constant dense<0.000000e+00> : vector<8x128xf32>
    %111 = tpu.matmul %103, %1, %cst_43 {dimension_numbers = #tpu.dot_dimension_numbers<[1], [0], [0], [1], [0, 0, 1, 1], [], []>} : vector<8x32xf32>, vector<32x128xf32>, vector<8x128xf32> -> vector<8x128xf32>
    %112 = arith.addf %110, %111 : vector<8x128xf32>
    %113 = math.tanh %112 : vector<8x128xf32>
    %114 = vector.extract_strided_slice %113 {offsets = [0, 0], sizes = [8, 96], strides = [1, 1]} : vector<8x128xf32> to vector<8x96xf32>
    %cst_44 = arith.constant 1.000000e+00 : f32
    %115 = vector.broadcast %cst_44 : f32 to vector<8x96xf32>
    %116 = arith.addf %114, %115 : vector<8x96xf32>
    %cst_45 = arith.constant 5.000000e-01 : f32
    %117 = vector.broadcast %cst_45 : f32 to vector<8x96xf32>
    %118 = arith.mulf %117, %116 : vector<8x96xf32>
    %119 = vector.extract_strided_slice %118 {offsets = [0, 0], sizes = [8, 32], strides = [1, 1]} : vector<8x96xf32> to vector<8x32xf32>
    %120 = vector.extract_strided_slice %118 {offsets = [0, 32], sizes = [8, 32], strides = [1, 1]} : vector<8x96xf32> to vector<8x32xf32>
    %121 = vector.extract_strided_slice %118 {offsets = [0, 64], sizes = [8, 32], strides = [1, 1]} : vector<8x96xf32> to vector<8x32xf32>
    %122 = vector.extract_strided_slice %113 {offsets = [0, 96], sizes = [8, 32], strides = [1, 1]} : vector<8x128xf32> to vector<8x32xf32>
    %123 = arith.mulf %120, %101 : vector<8x32xf32>
    %124 = arith.mulf %119, %122 : vector<8x32xf32>
    %125 = arith.addf %123, %124 : vector<8x32xf32>
    %126 = math.tanh %125 : vector<8x32xf32>
    %127 = arith.mulf %121, %126 : vector<8x32xf32>
    %128 = arith.index_cast %c4_i32 : i32 to index
    %c0_46 = arith.constant 0 : index
    %c0_47 = arith.constant 0 : index
    %129 = vector.load %arg15[%128, %c0_46, %c0_47] : memref<8x8x32xf32, #tpu.memory_space<vmem>>, vector<1x8x32xf32>
    %130 = vector.shape_cast %129 : vector<1x8x32xf32> to vector<8x32xf32>
    %131 = vector.shape_cast %127 : vector<8x32xf32> to vector<1x8x32xf32>
    tpu.vector_store %arg15[%128, %c0_46, %c0_47], %131 {strides = array<i32>} : memref<8x8x32xf32, #tpu.memory_space<vmem>>, vector<1x8x32xf32>,
    %c5_i32 = arith.constant 5 : i32
    %132 = arith.index_cast %c5_i32 : i32 to index
    %c0_48 = arith.constant 0 : index
    %c0_49 = arith.constant 0 : index
    %133 = vector.load %arg16[%132, %c0_48, %c0_49] : memref<8x8x128xf32, #tpu.memory_space<vmem>>, vector<1x8x128xf32>
    %134 = vector.shape_cast %133 : vector<1x8x128xf32> to vector<8x128xf32>
    %cst_50 = arith.constant dense<0.000000e+00> : vector<8x128xf32>
    %135 = tpu.matmul %127, %1, %cst_50 {dimension_numbers = #tpu.dot_dimension_numbers<[1], [0], [0], [1], [0, 0, 1, 1], [], []>} : vector<8x32xf32>, vector<32x128xf32>, vector<8x128xf32> -> vector<8x128xf32>
    %136 = arith.addf %134, %135 : vector<8x128xf32>
    %137 = math.tanh %136 : vector<8x128xf32>
    %138 = vector.extract_strided_slice %137 {offsets = [0, 0], sizes = [8, 96], strides = [1, 1]} : vector<8x128xf32> to vector<8x96xf32>
    %cst_51 = arith.constant 1.000000e+00 : f32
    %139 = vector.broadcast %cst_51 : f32 to vector<8x96xf32>
    %140 = arith.addf %138, %139 : vector<8x96xf32>
    %cst_52 = arith.constant 5.000000e-01 : f32
    %141 = vector.broadcast %cst_52 : f32 to vector<8x96xf32>
    %142 = arith.mulf %141, %140 : vector<8x96xf32>
    %143 = vector.extract_strided_slice %142 {offsets = [0, 0], sizes = [8, 32], strides = [1, 1]} : vector<8x96xf32> to vector<8x32xf32>
    %144 = vector.extract_strided_slice %142 {offsets = [0, 32], sizes = [8, 32], strides = [1, 1]} : vector<8x96xf32> to vector<8x32xf32>
    %145 = vector.extract_strided_slice %142 {offsets = [0, 64], sizes = [8, 32], strides = [1, 1]} : vector<8x96xf32> to vector<8x32xf32>
    %146 = vector.extract_strided_slice %137 {offsets = [0, 96], sizes = [8, 32], strides = [1, 1]} : vector<8x128xf32> to vector<8x32xf32>
    %147 = arith.mulf %144, %125 : vector<8x32xf32>
    %148 = arith.mulf %143, %146 : vector<8x32xf32>
    %149 = arith.addf %147, %148 : vector<8x32xf32>
    %150 = math.tanh %149 : vector<8x32xf32>
    %151 = arith.mulf %145, %150 : vector<8x32xf32>
    %152 = arith.index_cast %c5_i32 : i32 to index
    %c0_53 = arith.constant 0 : index
    %c0_54 = arith.constant 0 : index
    %153 = vector.load %arg15[%152, %c0_53, %c0_54] : memref<8x8x32xf32, #tpu.memory_space<vmem>>, vector<1x8x32xf32>
    %154 = vector.shape_cast %153 : vector<1x8x32xf32> to vector<8x32xf32>
    %155 = vector.shape_cast %151 : vector<8x32xf32> to vector<1x8x32xf32>
    tpu.vector_store %arg15[%152, %c0_53, %c0_54], %155 {strides = array<i32>} : memref<8x8x32xf32, #tpu.memory_space<vmem>>, vector<1x8x32xf32>,
    %c6_i32 = arith.constant 6 : i32
    %156 = arith.index_cast %c6_i32 : i32 to index
    %c0_55 = arith.constant 0 : index
    %c0_56 = arith.constant 0 : index
    %157 = vector.load %arg16[%156, %c0_55, %c0_56] : memref<8x8x128xf32, #tpu.memory_space<vmem>>, vector<1x8x128xf32>
    %158 = vector.shape_cast %157 : vector<1x8x128xf32> to vector<8x128xf32>
    %cst_57 = arith.constant dense<0.000000e+00> : vector<8x128xf32>
    %159 = tpu.matmul %151, %1, %cst_57 {dimension_numbers = #tpu.dot_dimension_numbers<[1], [0], [0], [1], [0, 0, 1, 1], [], []>} : vector<8x32xf32>, vector<32x128xf32>, vector<8x128xf32> -> vector<8x128xf32>
    %160 = arith.addf %158, %159 : vector<8x128xf32>
    %161 = math.tanh %160 : vector<8x128xf32>
    %162 = vector.extract_strided_slice %161 {offsets = [0, 0], sizes = [8, 96], strides = [1, 1]} : vector<8x128xf32> to vector<8x96xf32>
    %cst_58 = arith.constant 1.000000e+00 : f32
    %163 = vector.broadcast %cst_58 : f32 to vector<8x96xf32>
    %164 = arith.addf %162, %163 : vector<8x96xf32>
    %cst_59 = arith.constant 5.000000e-01 : f32
    %165 = vector.broadcast %cst_59 : f32 to vector<8x96xf32>
    %166 = arith.mulf %165, %164 : vector<8x96xf32>
    %167 = vector.extract_strided_slice %166 {offsets = [0, 0], sizes = [8, 32], strides = [1, 1]} : vector<8x96xf32> to vector<8x32xf32>
    %168 = vector.extract_strided_slice %166 {offsets = [0, 32], sizes = [8, 32], strides = [1, 1]} : vector<8x96xf32> to vector<8x32xf32>
    %169 = vector.extract_strided_slice %166 {offsets = [0, 64], sizes = [8, 32], strides = [1, 1]} : vector<8x96xf32> to vector<8x32xf32>
    %170 = vector.extract_strided_slice %161 {offsets = [0, 96], sizes = [8, 32], strides = [1, 1]} : vector<8x128xf32> to vector<8x32xf32>
    %171 = arith.mulf %168, %149 : vector<8x32xf32>
    %172 = arith.mulf %167, %170 : vector<8x32xf32>
    %173 = arith.addf %171, %172 : vector<8x32xf32>
    %174 = math.tanh %173 : vector<8x32xf32>
    %175 = arith.mulf %169, %174 : vector<8x32xf32>
    %176 = arith.index_cast %c6_i32 : i32 to index
    %c0_60 = arith.constant 0 : index
    %c0_61 = arith.constant 0 : index
    %177 = vector.load %arg15[%176, %c0_60, %c0_61] : memref<8x8x32xf32, #tpu.memory_space<vmem>>, vector<1x8x32xf32>
    %178 = vector.shape_cast %177 : vector<1x8x32xf32> to vector<8x32xf32>
    %179 = vector.shape_cast %175 : vector<8x32xf32> to vector<1x8x32xf32>
    tpu.vector_store %arg15[%176, %c0_60, %c0_61], %179 {strides = array<i32>} : memref<8x8x32xf32, #tpu.memory_space<vmem>>, vector<1x8x32xf32>,
    %c7_i32 = arith.constant 7 : i32
    %180 = arith.index_cast %c7_i32 : i32 to index
    %c0_62 = arith.constant 0 : index
    %c0_63 = arith.constant 0 : index
    %181 = vector.load %arg16[%180, %c0_62, %c0_63] : memref<8x8x128xf32, #tpu.memory_space<vmem>>, vector<1x8x128xf32>
    %182 = vector.shape_cast %181 : vector<1x8x128xf32> to vector<8x128xf32>
    %cst_64 = arith.constant dense<0.000000e+00> : vector<8x128xf32>
    %183 = tpu.matmul %175, %1, %cst_64 {dimension_numbers = #tpu.dot_dimension_numbers<[1], [0], [0], [1], [0, 0, 1, 1], [], []>} : vector<8x32xf32>, vector<32x128xf32>, vector<8x128xf32> -> vector<8x128xf32>
    %184 = arith.addf %182, %183 : vector<8x128xf32>
    %185 = math.tanh %184 : vector<8x128xf32>
    %186 = vector.extract_strided_slice %185 {offsets = [0, 0], sizes = [8, 96], strides = [1, 1]} : vector<8x128xf32> to vector<8x96xf32>
    %cst_65 = arith.constant 1.000000e+00 : f32
    %187 = vector.broadcast %cst_65 : f32 to vector<8x96xf32>
    %188 = arith.addf %186, %187 : vector<8x96xf32>
    %cst_66 = arith.constant 5.000000e-01 : f32
    %189 = vector.broadcast %cst_66 : f32 to vector<8x96xf32>
    %190 = arith.mulf %189, %188 : vector<8x96xf32>
    %191 = vector.extract_strided_slice %190 {offsets = [0, 0], sizes = [8, 32], strides = [1, 1]} : vector<8x96xf32> to vector<8x32xf32>
    %192 = vector.extract_strided_slice %190 {offsets = [0, 32], sizes = [8, 32], strides = [1, 1]} : vector<8x96xf32> to vector<8x32xf32>
    %193 = vector.extract_strided_slice %190 {offsets = [0, 64], sizes = [8, 32], strides = [1, 1]} : vector<8x96xf32> to vector<8x32xf32>
    %194 = vector.extract_strided_slice %185 {offsets = [0, 96], sizes = [8, 32], strides = [1, 1]} : vector<8x128xf32> to vector<8x32xf32>
    %195 = arith.mulf %192, %173 : vector<8x32xf32>
    %196 = arith.mulf %191, %194 : vector<8x32xf32>
    %197 = arith.addf %195, %196 : vector<8x32xf32>
    %198 = math.tanh %197 : vector<8x32xf32>
    %199 = arith.mulf %193, %198 : vector<8x32xf32>
    %200 = arith.index_cast %c7_i32 : i32 to index
    %c0_67 = arith.constant 0 : index
    %c0_68 = arith.constant 0 : index
    %201 = vector.load %arg15[%200, %c0_67, %c0_68] : memref<8x8x32xf32, #tpu.memory_space<vmem>>, vector<1x8x32xf32>
    %202 = vector.shape_cast %201 : vector<1x8x32xf32> to vector<8x32xf32>
    %203 = vector.shape_cast %199 : vector<8x32xf32> to vector<1x8x32xf32>
    tpu.vector_store %arg15[%200, %c0_67, %c0_68], %203 {strides = array<i32>} : memref<8x8x32xf32, #tpu.memory_space<vmem>>, vector<1x8x32xf32>,
    %c8_i32 = arith.constant 8 : i32
    %c0_69 = arith.constant 0 : index
    %c0_70 = arith.constant 0 : index
    %204 = vector.load %arg6[%c0_69, %c0_70] : memref<32x128xf32, #tpu.memory_space<vmem>>, vector<32x128xf32>
    %c0_71 = arith.constant 0 : index
    %c0_72 = arith.constant 0 : index
    %205 = vector.load %arg7[%c0_71, %c0_72] : memref<32x128xf32, #tpu.memory_space<vmem>>, vector<32x128xf32>
    %c0_73 = arith.constant 0 : index
    %c0_74 = arith.constant 0 : index
    %206 = vector.load %arg8[%c0_73, %c0_74] : memref<1x128xf32, #tpu.memory_space<vmem>>, vector<1x128xf32>
    %c0_75 = arith.constant 0 : index
    %c0_76 = arith.constant 0 : index
    %c0_77 = arith.constant 0 : index
    %207 = vector.load %arg15[%c0_75, %c0_76, %c0_77] : memref<8x8x32xf32, #tpu.memory_space<vmem>>, vector<8x8x32xf32>
    %208 = vector.shape_cast %207 : vector<8x8x32xf32> to vector<64x32xf32>
    %cst_78 = arith.constant dense<0.000000e+00> : vector<64x128xf32>
    %209 = tpu.matmul %208, %204, %cst_78 {dimension_numbers = #tpu.dot_dimension_numbers<[1], [0], [0], [1], [0, 0, 1, 1], [], []>} : vector<64x32xf32>, vector<32x128xf32>, vector<64x128xf32> -> vector<64x128xf32>
    %210 = vector.broadcast %206 : vector<1x128xf32> to vector<64x128xf32>
    %211 = arith.addf %209, %210 : vector<64x128xf32>
    %212 = vector.shape_cast %211 : vector<64x128xf32> to vector<8x8x128xf32>
    %c0_79 = arith.constant 0 : index
    %c0_80 = arith.constant 0 : index
    %c0_81 = arith.constant 0 : index
    %213 = vector.load %arg16[%c0_79, %c0_80, %c0_81] : memref<8x8x128xf32, #tpu.memory_space<vmem>>, vector<8x8x128xf32>
    tpu.vector_store %arg16[%c0_79, %c0_80, %c0_81], %212 {strides = array<i32>} : memref<8x8x128xf32, #tpu.memory_space<vmem>>, vector<8x8x128xf32>,
    %cst_82 = arith.constant 0.000000e+00 : f32
    %214 = vector.broadcast %cst_82 : f32 to vector<8x32xf32>
    %cst_83 = arith.constant 0.000000e+00 : f32
    %215 = vector.broadcast %cst_83 : f32 to vector<8x32xf32>
    %c0_i32_84 = arith.constant 0 : i32
    %216 = arith.index_cast %c0_i32_84 : i32 to index
    %c0_85 = arith.constant 0 : index
    %c0_86 = arith.constant 0 : index
    %217 = vector.load %arg16[%216, %c0_85, %c0_86] : memref<8x8x128xf32, #tpu.memory_space<vmem>>, vector<1x8x128xf32>
    %218 = vector.shape_cast %217 : vector<1x8x128xf32> to vector<8x128xf32>
    %cst_87 = arith.constant dense<0.000000e+00> : vector<8x128xf32>
    %219 = tpu.matmul %214, %205, %cst_87 {dimension_numbers = #tpu.dot_dimension_numbers<[1], [0], [0], [1], [0, 0, 1, 1], [], []>} : vector<8x32xf32>, vector<32x128xf32>, vector<8x128xf32> -> vector<8x128xf32>
    %220 = arith.addf %218, %219 : vector<8x128xf32>
    %221 = math.tanh %220 : vector<8x128xf32>
    %222 = vector.extract_strided_slice %221 {offsets = [0, 0], sizes = [8, 96], strides = [1, 1]} : vector<8x128xf32> to vector<8x96xf32>
    %cst_88 = arith.constant 1.000000e+00 : f32
    %223 = vector.broadcast %cst_88 : f32 to vector<8x96xf32>
    %224 = arith.addf %222, %223 : vector<8x96xf32>
    %cst_89 = arith.constant 5.000000e-01 : f32
    %225 = vector.broadcast %cst_89 : f32 to vector<8x96xf32>
    %226 = arith.mulf %225, %224 : vector<8x96xf32>
    %227 = vector.extract_strided_slice %226 {offsets = [0, 0], sizes = [8, 32], strides = [1, 1]} : vector<8x96xf32> to vector<8x32xf32>
    %228 = vector.extract_strided_slice %226 {offsets = [0, 32], sizes = [8, 32], strides = [1, 1]} : vector<8x96xf32> to vector<8x32xf32>
    %229 = vector.extract_strided_slice %226 {offsets = [0, 64], sizes = [8, 32], strides = [1, 1]} : vector<8x96xf32> to vector<8x32xf32>
    %230 = vector.extract_strided_slice %221 {offsets = [0, 96], sizes = [8, 32], strides = [1, 1]} : vector<8x128xf32> to vector<8x32xf32>
    %231 = arith.mulf %228, %215 : vector<8x32xf32>
    %232 = arith.mulf %227, %230 : vector<8x32xf32>
    %233 = arith.addf %231, %232 : vector<8x32xf32>
    %234 = math.tanh %233 : vector<8x32xf32>
    %235 = arith.mulf %229, %234 : vector<8x32xf32>
    %c1_i32_90 = arith.constant 1 : i32
    %236 = arith.index_cast %c1_i32_90 : i32 to index
    %c0_91 = arith.constant 0 : index
    %c0_92 = arith.constant 0 : index
    %237 = vector.load %arg16[%236, %c0_91, %c0_92] : memref<8x8x128xf32, #tpu.memory_space<vmem>>, vector<1x8x128xf32>
    %238 = vector.shape_cast %237 : vector<1x8x128xf32> to vector<8x128xf32>
    %cst_93 = arith.constant dense<0.000000e+00> : vector<8x128xf32>
    %239 = tpu.matmul %235, %205, %cst_93 {dimension_numbers = #tpu.dot_dimension_numbers<[1], [0], [0], [1], [0, 0, 1, 1], [], []>} : vector<8x32xf32>, vector<32x128xf32>, vector<8x128xf32> -> vector<8x128xf32>
    %240 = arith.addf %238, %239 : vector<8x128xf32>
    %241 = math.tanh %240 : vector<8x128xf32>
    %242 = vector.extract_strided_slice %241 {offsets = [0, 0], sizes = [8, 96], strides = [1, 1]} : vector<8x128xf32> to vector<8x96xf32>
    %cst_94 = arith.constant 1.000000e+00 : f32
    %243 = vector.broadcast %cst_94 : f32 to vector<8x96xf32>
    %244 = arith.addf %242, %243 : vector<8x96xf32>
    %cst_95 = arith.constant 5.000000e-01 : f32
    %245 = vector.broadcast %cst_95 : f32 to vector<8x96xf32>
    %246 = arith.mulf %245, %244 : vector<8x96xf32>
    %247 = vector.extract_strided_slice %246 {offsets = [0, 0], sizes = [8, 32], strides = [1, 1]} : vector<8x96xf32> to vector<8x32xf32>
    %248 = vector.extract_strided_slice %246 {offsets = [0, 32], sizes = [8, 32], strides = [1, 1]} : vector<8x96xf32> to vector<8x32xf32>
    %249 = vector.extract_strided_slice %246 {offsets = [0, 64], sizes = [8, 32], strides = [1, 1]} : vector<8x96xf32> to vector<8x32xf32>
    %250 = vector.extract_strided_slice %241 {offsets = [0, 96], sizes = [8, 32], strides = [1, 1]} : vector<8x128xf32> to vector<8x32xf32>
    %251 = arith.mulf %248, %233 : vector<8x32xf32>
    %252 = arith.mulf %247, %250 : vector<8x32xf32>
    %253 = arith.addf %251, %252 : vector<8x32xf32>
    %254 = math.tanh %253 : vector<8x32xf32>
    %255 = arith.mulf %249, %254 : vector<8x32xf32>
    %c2_i32_96 = arith.constant 2 : i32
    %256 = arith.index_cast %c2_i32_96 : i32 to index
    %c0_97 = arith.constant 0 : index
    %c0_98 = arith.constant 0 : index
    %257 = vector.load %arg16[%256, %c0_97, %c0_98] : memref<8x8x128xf32, #tpu.memory_space<vmem>>, vector<1x8x128xf32>
    %258 = vector.shape_cast %257 : vector<1x8x128xf32> to vector<8x128xf32>
    %cst_99 = arith.constant dense<0.000000e+00> : vector<8x128xf32>
    %259 = tpu.matmul %255, %205, %cst_99 {dimension_numbers = #tpu.dot_dimension_numbers<[1], [0], [0], [1], [0, 0, 1, 1], [], []>} : vector<8x32xf32>, vector<32x128xf32>, vector<8x128xf32> -> vector<8x128xf32>
    %260 = arith.addf %258, %259 : vector<8x128xf32>
    %261 = math.tanh %260 : vector<8x128xf32>
    %262 = vector.extract_strided_slice %261 {offsets = [0, 0], sizes = [8, 96], strides = [1, 1]} : vector<8x128xf32> to vector<8x96xf32>
    %cst_100 = arith.constant 1.000000e+00 : f32
    %263 = vector.broadcast %cst_100 : f32 to vector<8x96xf32>
    %264 = arith.addf %262, %263 : vector<8x96xf32>
    %cst_101 = arith.constant 5.000000e-01 : f32
    %265 = vector.broadcast %cst_101 : f32 to vector<8x96xf32>
    %266 = arith.mulf %265, %264 : vector<8x96xf32>
    %267 = vector.extract_strided_slice %266 {offsets = [0, 0], sizes = [8, 32], strides = [1, 1]} : vector<8x96xf32> to vector<8x32xf32>
    %268 = vector.extract_strided_slice %266 {offsets = [0, 32], sizes = [8, 32], strides = [1, 1]} : vector<8x96xf32> to vector<8x32xf32>
    %269 = vector.extract_strided_slice %266 {offsets = [0, 64], sizes = [8, 32], strides = [1, 1]} : vector<8x96xf32> to vector<8x32xf32>
    %270 = vector.extract_strided_slice %261 {offsets = [0, 96], sizes = [8, 32], strides = [1, 1]} : vector<8x128xf32> to vector<8x32xf32>
    %271 = arith.mulf %268, %253 : vector<8x32xf32>
    %272 = arith.mulf %267, %270 : vector<8x32xf32>
    %273 = arith.addf %271, %272 : vector<8x32xf32>
    %274 = math.tanh %273 : vector<8x32xf32>
    %275 = arith.mulf %269, %274 : vector<8x32xf32>
    %c3_i32_102 = arith.constant 3 : i32
    %276 = arith.index_cast %c3_i32_102 : i32 to index
    %c0_103 = arith.constant 0 : index
    %c0_104 = arith.constant 0 : index
    %277 = vector.load %arg16[%276, %c0_103, %c0_104] : memref<8x8x128xf32, #tpu.memory_space<vmem>>, vector<1x8x128xf32>
    %278 = vector.shape_cast %277 : vector<1x8x128xf32> to vector<8x128xf32>
    %cst_105 = arith.constant dense<0.000000e+00> : vector<8x128xf32>
    %279 = tpu.matmul %275, %205, %cst_105 {dimension_numbers = #tpu.dot_dimension_numbers<[1], [0], [0], [1], [0, 0, 1, 1], [], []>} : vector<8x32xf32>, vector<32x128xf32>, vector<8x128xf32> -> vector<8x128xf32>
    %280 = arith.addf %278, %279 : vector<8x128xf32>
    %281 = math.tanh %280 : vector<8x128xf32>
    %282 = vector.extract_strided_slice %281 {offsets = [0, 0], sizes = [8, 96], strides = [1, 1]} : vector<8x128xf32> to vector<8x96xf32>
    %cst_106 = arith.constant 1.000000e+00 : f32
    %283 = vector.broadcast %cst_106 : f32 to vector<8x96xf32>
    %284 = arith.addf %282, %283 : vector<8x96xf32>
    %cst_107 = arith.constant 5.000000e-01 : f32
    %285 = vector.broadcast %cst_107 : f32 to vector<8x96xf32>
    %286 = arith.mulf %285, %284 : vector<8x96xf32>
    %287 = vector.extract_strided_slice %286 {offsets = [0, 0], sizes = [8, 32], strides = [1, 1]} : vector<8x96xf32> to vector<8x32xf32>
    %288 = vector.extract_strided_slice %286 {offsets = [0, 32], sizes = [8, 32], strides = [1, 1]} : vector<8x96xf32> to vector<8x32xf32>
    %289 = vector.extract_strided_slice %286 {offsets = [0, 64], sizes = [8, 32], strides = [1, 1]} : vector<8x96xf32> to vector<8x32xf32>
    %290 = vector.extract_strided_slice %281 {offsets = [0, 96], sizes = [8, 32], strides = [1, 1]} : vector<8x128xf32> to vector<8x32xf32>
    %291 = arith.mulf %288, %273 : vector<8x32xf32>
    %292 = arith.mulf %287, %290 : vector<8x32xf32>
    %293 = arith.addf %291, %292 : vector<8x32xf32>
    %294 = math.tanh %293 : vector<8x32xf32>
    %295 = arith.mulf %289, %294 : vector<8x32xf32>
    %c4_i32_108 = arith.constant 4 : i32
    %296 = arith.index_cast %c4_i32_108 : i32 to index
    %c0_109 = arith.constant 0 : index
    %c0_110 = arith.constant 0 : index
    %297 = vector.load %arg16[%296, %c0_109, %c0_110] : memref<8x8x128xf32, #tpu.memory_space<vmem>>, vector<1x8x128xf32>
    %298 = vector.shape_cast %297 : vector<1x8x128xf32> to vector<8x128xf32>
    %cst_111 = arith.constant dense<0.000000e+00> : vector<8x128xf32>
    %299 = tpu.matmul %295, %205, %cst_111 {dimension_numbers = #tpu.dot_dimension_numbers<[1], [0], [0], [1], [0, 0, 1, 1], [], []>} : vector<8x32xf32>, vector<32x128xf32>, vector<8x128xf32> -> vector<8x128xf32>
    %300 = arith.addf %298, %299 : vector<8x128xf32>
    %301 = math.tanh %300 : vector<8x128xf32>
    %302 = vector.extract_strided_slice %301 {offsets = [0, 0], sizes = [8, 96], strides = [1, 1]} : vector<8x128xf32> to vector<8x96xf32>
    %cst_112 = arith.constant 1.000000e+00 : f32
    %303 = vector.broadcast %cst_112 : f32 to vector<8x96xf32>
    %304 = arith.addf %302, %303 : vector<8x96xf32>
    %cst_113 = arith.constant 5.000000e-01 : f32
    %305 = vector.broadcast %cst_113 : f32 to vector<8x96xf32>
    %306 = arith.mulf %305, %304 : vector<8x96xf32>
    %307 = vector.extract_strided_slice %306 {offsets = [0, 0], sizes = [8, 32], strides = [1, 1]} : vector<8x96xf32> to vector<8x32xf32>
    %308 = vector.extract_strided_slice %306 {offsets = [0, 32], sizes = [8, 32], strides = [1, 1]} : vector<8x96xf32> to vector<8x32xf32>
    %309 = vector.extract_strided_slice %306 {offsets = [0, 64], sizes = [8, 32], strides = [1, 1]} : vector<8x96xf32> to vector<8x32xf32>
    %310 = vector.extract_strided_slice %301 {offsets = [0, 96], sizes = [8, 32], strides = [1, 1]} : vector<8x128xf32> to vector<8x32xf32>
    %311 = arith.mulf %308, %293 : vector<8x32xf32>
    %312 = arith.mulf %307, %310 : vector<8x32xf32>
    %313 = arith.addf %311, %312 : vector<8x32xf32>
    %314 = math.tanh %313 : vector<8x32xf32>
    %315 = arith.mulf %309, %314 : vector<8x32xf32>
    %c5_i32_114 = arith.constant 5 : i32
    %316 = arith.index_cast %c5_i32_114 : i32 to index
    %c0_115 = arith.constant 0 : index
    %c0_116 = arith.constant 0 : index
    %317 = vector.load %arg16[%316, %c0_115, %c0_116] : memref<8x8x128xf32, #tpu.memory_space<vmem>>, vector<1x8x128xf32>
    %318 = vector.shape_cast %317 : vector<1x8x128xf32> to vector<8x128xf32>
    %cst_117 = arith.constant dense<0.000000e+00> : vector<8x128xf32>
    %319 = tpu.matmul %315, %205, %cst_117 {dimension_numbers = #tpu.dot_dimension_numbers<[1], [0], [0], [1], [0, 0, 1, 1], [], []>} : vector<8x32xf32>, vector<32x128xf32>, vector<8x128xf32> -> vector<8x128xf32>
    %320 = arith.addf %318, %319 : vector<8x128xf32>
    %321 = math.tanh %320 : vector<8x128xf32>
    %322 = vector.extract_strided_slice %321 {offsets = [0, 0], sizes = [8, 96], strides = [1, 1]} : vector<8x128xf32> to vector<8x96xf32>
    %cst_118 = arith.constant 1.000000e+00 : f32
    %323 = vector.broadcast %cst_118 : f32 to vector<8x96xf32>
    %324 = arith.addf %322, %323 : vector<8x96xf32>
    %cst_119 = arith.constant 5.000000e-01 : f32
    %325 = vector.broadcast %cst_119 : f32 to vector<8x96xf32>
    %326 = arith.mulf %325, %324 : vector<8x96xf32>
    %327 = vector.extract_strided_slice %326 {offsets = [0, 0], sizes = [8, 32], strides = [1, 1]} : vector<8x96xf32> to vector<8x32xf32>
    %328 = vector.extract_strided_slice %326 {offsets = [0, 32], sizes = [8, 32], strides = [1, 1]} : vector<8x96xf32> to vector<8x32xf32>
    %329 = vector.extract_strided_slice %326 {offsets = [0, 64], sizes = [8, 32], strides = [1, 1]} : vector<8x96xf32> to vector<8x32xf32>
    %330 = vector.extract_strided_slice %321 {offsets = [0, 96], sizes = [8, 32], strides = [1, 1]} : vector<8x128xf32> to vector<8x32xf32>
    %331 = arith.mulf %328, %313 : vector<8x32xf32>
    %332 = arith.mulf %327, %330 : vector<8x32xf32>
    %333 = arith.addf %331, %332 : vector<8x32xf32>
    %334 = math.tanh %333 : vector<8x32xf32>
    %335 = arith.mulf %329, %334 : vector<8x32xf32>
    %c6_i32_120 = arith.constant 6 : i32
    %336 = arith.index_cast %c6_i32_120 : i32 to index
    %c0_121 = arith.constant 0 : index
    %c0_122 = arith.constant 0 : index
    %337 = vector.load %arg16[%336, %c0_121, %c0_122] : memref<8x8x128xf32, #tpu.memory_space<vmem>>, vector<1x8x128xf32>
    %338 = vector.shape_cast %337 : vector<1x8x128xf32> to vector<8x128xf32>
    %cst_123 = arith.constant dense<0.000000e+00> : vector<8x128xf32>
    %339 = tpu.matmul %335, %205, %cst_123 {dimension_numbers = #tpu.dot_dimension_numbers<[1], [0], [0], [1], [0, 0, 1, 1], [], []>} : vector<8x32xf32>, vector<32x128xf32>, vector<8x128xf32> -> vector<8x128xf32>
    %340 = arith.addf %338, %339 : vector<8x128xf32>
    %341 = math.tanh %340 : vector<8x128xf32>
    %342 = vector.extract_strided_slice %341 {offsets = [0, 0], sizes = [8, 96], strides = [1, 1]} : vector<8x128xf32> to vector<8x96xf32>
    %cst_124 = arith.constant 1.000000e+00 : f32
    %343 = vector.broadcast %cst_124 : f32 to vector<8x96xf32>
    %344 = arith.addf %342, %343 : vector<8x96xf32>
    %cst_125 = arith.constant 5.000000e-01 : f32
    %345 = vector.broadcast %cst_125 : f32 to vector<8x96xf32>
    %346 = arith.mulf %345, %344 : vector<8x96xf32>
    %347 = vector.extract_strided_slice %346 {offsets = [0, 0], sizes = [8, 32], strides = [1, 1]} : vector<8x96xf32> to vector<8x32xf32>
    %348 = vector.extract_strided_slice %346 {offsets = [0, 32], sizes = [8, 32], strides = [1, 1]} : vector<8x96xf32> to vector<8x32xf32>
    %349 = vector.extract_strided_slice %346 {offsets = [0, 64], sizes = [8, 32], strides = [1, 1]} : vector<8x96xf32> to vector<8x32xf32>
    %350 = vector.extract_strided_slice %341 {offsets = [0, 96], sizes = [8, 32], strides = [1, 1]} : vector<8x128xf32> to vector<8x32xf32>
    %351 = arith.mulf %348, %333 : vector<8x32xf32>
    %352 = arith.mulf %347, %350 : vector<8x32xf32>
    %353 = arith.addf %351, %352 : vector<8x32xf32>
    %354 = math.tanh %353 : vector<8x32xf32>
    %355 = arith.mulf %349, %354 : vector<8x32xf32>
    %c7_i32_126 = arith.constant 7 : i32
    %356 = arith.index_cast %c7_i32_126 : i32 to index
    %c0_127 = arith.constant 0 : index
    %c0_128 = arith.constant 0 : index
    %357 = vector.load %arg16[%356, %c0_127, %c0_128] : memref<8x8x128xf32, #tpu.memory_space<vmem>>, vector<1x8x128xf32>
    %358 = vector.shape_cast %357 : vector<1x8x128xf32> to vector<8x128xf32>
    %cst_129 = arith.constant dense<0.000000e+00> : vector<8x128xf32>
    %359 = tpu.matmul %355, %205, %cst_129 {dimension_numbers = #tpu.dot_dimension_numbers<[1], [0], [0], [1], [0, 0, 1, 1], [], []>} : vector<8x32xf32>, vector<32x128xf32>, vector<8x128xf32> -> vector<8x128xf32>
    %360 = arith.addf %358, %359 : vector<8x128xf32>
    %361 = math.tanh %360 : vector<8x128xf32>
    %362 = vector.extract_strided_slice %361 {offsets = [0, 0], sizes = [8, 96], strides = [1, 1]} : vector<8x128xf32> to vector<8x96xf32>
    %cst_130 = arith.constant 1.000000e+00 : f32
    %363 = vector.broadcast %cst_130 : f32 to vector<8x96xf32>
    %364 = arith.addf %362, %363 : vector<8x96xf32>
    %cst_131 = arith.constant 5.000000e-01 : f32
    %365 = vector.broadcast %cst_131 : f32 to vector<8x96xf32>
    %366 = arith.mulf %365, %364 : vector<8x96xf32>
    %367 = vector.extract_strided_slice %366 {offsets = [0, 0], sizes = [8, 32], strides = [1, 1]} : vector<8x96xf32> to vector<8x32xf32>
    %368 = vector.extract_strided_slice %366 {offsets = [0, 32], sizes = [8, 32], strides = [1, 1]} : vector<8x96xf32> to vector<8x32xf32>
    %369 = vector.extract_strided_slice %366 {offsets = [0, 64], sizes = [8, 32], strides = [1, 1]} : vector<8x96xf32> to vector<8x32xf32>
    %370 = vector.extract_strided_slice %361 {offsets = [0, 96], sizes = [8, 32], strides = [1, 1]} : vector<8x128xf32> to vector<8x32xf32>
    %371 = arith.mulf %368, %353 : vector<8x32xf32>
    %372 = arith.mulf %367, %370 : vector<8x32xf32>
    %373 = arith.addf %371, %372 : vector<8x32xf32>
    %374 = math.tanh %373 : vector<8x32xf32>
    %375 = arith.mulf %369, %374 : vector<8x32xf32>
    %c8_i32_132 = arith.constant 8 : i32
    %c0_133 = arith.constant 0 : index
    %c0_134 = arith.constant 0 : index
    %376 = vector.load %arg2[%c0_133, %c0_134] : memref<8x8xf32, #tpu.memory_space<vmem>>, vector<8x8xf32>
    %c0_135 = arith.constant 0 : index
    %c0_136 = arith.constant 0 : index
    %377 = vector.load %arg9[%c0_135, %c0_136] : memref<32x128xf32, #tpu.memory_space<vmem>>, vector<32x128xf32>
    %cst_137 = arith.constant dense<0.000000e+00> : vector<8x128xf32>
    %378 = tpu.matmul %375, %377, %cst_137 {dimension_numbers = #tpu.dot_dimension_numbers<[1], [0], [0], [1], [0, 0, 1, 1], [], []>} : vector<8x32xf32>, vector<32x128xf32>, vector<8x128xf32> -> vector<8x128xf32>
    %c0_138 = arith.constant 0 : index
    %c0_139 = arith.constant 0 : index
    %379 = vector.load %arg10[%c0_138, %c0_139] : memref<8x128xf32, #tpu.memory_space<vmem>>, vector<8x128xf32>
    %cst_140 = arith.constant dense<0.000000e+00> : vector<8x128xf32>
    %380 = tpu.matmul %376, %379, %cst_140 {dimension_numbers = #tpu.dot_dimension_numbers<[1], [0], [0], [1], [0, 0, 1, 1], [], []>} : vector<8x8xf32>, vector<8x128xf32>, vector<8x128xf32> -> vector<8x128xf32>
    %381 = arith.addf %378, %380 : vector<8x128xf32>
    %c0_141 = arith.constant 0 : index
    %c0_142 = arith.constant 0 : index
    %382 = vector.load %arg11[%c0_141, %c0_142] : memref<1x128xf32, #tpu.memory_space<vmem>>, vector<1x128xf32>
    %383 = vector.broadcast %382 : vector<1x128xf32> to vector<8x128xf32>
    %384 = arith.addf %381, %383 : vector<8x128xf32>
    %cst_143 = arith.constant 0.000000e+00 : f32
    %385 = vector.broadcast %cst_143 : f32 to vector<8x128xf32>
    %386 = arith.maximumf %384, %385 : vector<8x128xf32>
    %c0_144 = arith.constant 0 : index
    %c0_145 = arith.constant 0 : index
    %387 = vector.load %arg12[%c0_144, %c0_145] : memref<128x1xf32, #tpu.memory_space<vmem>>, vector<128x1xf32>
    %cst_146 = arith.constant dense<0.000000e+00> : vector<8x1xf32>
    %388 = tpu.matmul %386, %387, %cst_146 {dimension_numbers = #tpu.dot_dimension_numbers<[1], [0], [0], [1], [0, 0, 1, 1], [], []>} : vector<8x128xf32>, vector<128x1xf32>, vector<8x1xf32> -> vector<8x1xf32>
    %c0_147 = arith.constant 0 : index
    %c0_148 = arith.constant 0 : index
    %389 = vector.load %arg13[%c0_147, %c0_148] : memref<1x1xf32, #tpu.memory_space<vmem>>, vector<1x1xf32>
    %390 = vector.broadcast %389 : vector<1x1xf32> to vector<8x1xf32>
    %391 = arith.addf %388, %390 : vector<8x1xf32>
    %c0_149 = arith.constant 0 : index
    %c0_150 = arith.constant 0 : index
    %392 = vector.load %arg14[%c0_149, %c0_150] : memref<8x1xf32, #tpu.memory_space<vmem>>, vector<8x1xf32>
    tpu.vector_store %arg14[%c0_149, %c0_150], %391 {strides = array<i32>} : memref<8x1xf32, #tpu.memory_space<vmem>>, vector<8x1xf32>,
    return
  }
  func.func @transform_0(%arg0: i32) -> (i32, i32, i32) {
    %c0_i32 = arith.constant 0 : i32
    %c0_i32_0 = arith.constant 0 : i32
    %c0_i32_1 = arith.constant 0 : i32
    return %c0_i32, %arg0, %c0_i32_0 : i32, i32, i32
  }
  func.func @transform_1(%arg0: i32) -> (i32, i32) {
    %c0_i32 = arith.constant 0 : i32
    %c0_i32_0 = arith.constant 0 : i32
    return %arg0, %c0_i32 : i32, i32
  }
  func.func @transform_2(%arg0: i32) -> (i32, i32) {
    %c0_i32 = arith.constant 0 : i32
    %c0_i32_0 = arith.constant 0 : i32
    %c0_i32_1 = arith.constant 0 : i32
    return %c0_i32, %c0_i32_0 : i32, i32
  }
  func.func @transform_3(%arg0: i32) -> (i32, i32) {
    %c0_i32 = arith.constant 0 : i32
    %c0_i32_0 = arith.constant 0 : i32
    %c0_i32_1 = arith.constant 0 : i32
    return %c0_i32, %c0_i32_0 : i32, i32
  }
  func.func @transform_4(%arg0: i32) -> (i32, i32) {
    %c0_i32 = arith.constant 0 : i32
    %c0_i32_0 = arith.constant 0 : i32
    %c0_i32_1 = arith.constant 0 : i32
    return %c0_i32, %c0_i32_0 : i32, i32
  }
  func.func @transform_5(%arg0: i32) -> (i32, i32) {
    %c0_i32 = arith.constant 0 : i32
    %c0_i32_0 = arith.constant 0 : i32
    %c0_i32_1 = arith.constant 0 : i32
    return %c0_i32, %c0_i32_0 : i32, i32
  }
  func.func @transform_6(%arg0: i32) -> (i32, i32) {
    %c0_i32 = arith.constant 0 : i32
    %c0_i32_0 = arith.constant 0 : i32
    %c0_i32_1 = arith.constant 0 : i32
    return %c0_i32, %c0_i32_0 : i32, i32
  }
  func.func @transform_7(%arg0: i32) -> (i32, i32) {
    %c0_i32 = arith.constant 0 : i32
    %c0_i32_0 = arith.constant 0 : i32
    %c0_i32_1 = arith.constant 0 : i32
    return %c0_i32, %c0_i32_0 : i32, i32
  }
  func.func @transform_8(%arg0: i32) -> (i32, i32) {
    %c0_i32 = arith.constant 0 : i32
    %c0_i32_0 = arith.constant 0 : i32
    %c0_i32_1 = arith.constant 0 : i32
    return %c0_i32, %c0_i32_0 : i32, i32
  }
  func.func @transform_9(%arg0: i32) -> (i32, i32) {
    %c0_i32 = arith.constant 0 : i32
    %c0_i32_0 = arith.constant 0 : i32
    %c0_i32_1 = arith.constant 0 : i32
    return %c0_i32, %c0_i32_0 : i32, i32
  }
  func.func @transform_10(%arg0: i32) -> (i32, i32) {
    %c0_i32 = arith.constant 0 : i32
    %c0_i32_0 = arith.constant 0 : i32
    %c0_i32_1 = arith.constant 0 : i32
    return %c0_i32, %c0_i32_0 : i32, i32
  }
  func.func @transform_11(%arg0: i32) -> (i32, i32) {
    %c0_i32 = arith.constant 0 : i32
    %c0_i32_0 = arith.constant 0 : i32
    %c0_i32_1 = arith.constant 0 : i32
    return %c0_i32, %c0_i32_0 : i32, i32
  }
  func.func @transform_12(%arg0: i32) -> (i32, i32) {
    %c0_i32 = arith.constant 0 : i32
    %c0_i32_0 = arith.constant 0 : i32
    %c0_i32_1 = arith.constant 0 : i32
    return %c0_i32, %c0_i32_0 : i32, i32
  }
  func.func @transform_13(%arg0: i32) -> (i32, i32) {
    %c0_i32 = arith.constant 0 : i32
    %c0_i32_0 = arith.constant 0 : i32
    return %arg0, %c0_i32 : i32, i32
  }
}

</mosaic_0001>

<llo_original>
// kernel: tpu_custom_call.1
$region0: #{tpu_custom_call.1}
  #allocation0 [shape = 'u32[]', space=smem, size = 0x4, offset = 0x4, fixed_abs, tag = 'smem constant byte address 0x4 - core index']
  #allocation1 [shape = 'u32[72,128]{1,0:T(1,128)}', space=vmem, size = 0x9000, scoped, tag = 'internal scratch']
  #allocation2 [shape = 'f32[8,8,32]{2,1,0:T(8,128)}', space=vmem, size = 0x8000, scoped, tag = 'scratch operand']
  #allocation3 [shape = 'f32[8,8,128]{2,1,0:T(8,128)}', space=vmem, size = 0x8000, scoped, tag = 'scratch operand']
  #allocation4 [shape = 'f32[1,1]{1,0:T(1,128)S(1)}', space=vmem, size = 0x200, scoped, tag = 'scoped memory for tpu_custom_call.1']
  %s0 = inlined_call_operand.vmem [shape: f32[8,8,16], index: 0, kind: input, shape index: {}]
  %s1 = inlined_call_operand.hbm [shape: f32[8,8], index: 1, kind: input, shape index: {}]
  %s2 = inlined_call_operand.hbm [shape: f32[16,128], index: 2, kind: input, shape index: {}]
  %s3 = inlined_call_operand.vmem [shape: f32[32,128], index: 3, kind: input, shape index: {}]
  %s4 = inlined_call_operand.vmem [shape: f32[1,128], index: 4, kind: input, shape index: {}]
  %s5 = inlined_call_operand.vmem [shape: f32[32,128], index: 5, kind: input, shape index: {}]
  %s6 = inlined_call_operand.hbm [shape: f32[32,128], index: 6, kind: input, shape index: {}]
  %s7 = inlined_call_operand.hbm [shape: f32[1,128], index: 7, kind: input, shape index: {}]
  %s8 = inlined_call_operand.hbm [shape: f32[32,128], index: 8, kind: input, shape index: {}]
  %s9 = inlined_call_operand.vmem [shape: f32[8,128], index: 9, kind: input, shape index: {}]
  %s10 = inlined_call_operand.vmem [shape: f32[1,128], index: 10, kind: input, shape index: {}]
  %s11 = inlined_call_operand.vmem [shape: f32[128,1], index: 11, kind: input, shape index: {}]
  %s12 = inlined_call_operand.<no memory space> [shape: f32[1,1], index: 12, kind: input, shape index: {}]
  %s13 = inlined_call_operand.vmem [shape: f32[8,1], index: 13, kind: output, shape index: {}]
  %s14 = sld [smem:[#allocation0]]
  $region82: #{tpu_custom_call.1} parent=0
    _
  %s16 = ssub.s32 1, %s14
  %s17 = scalar_select 0, %s16, %s14
  %v18 = vstv %s12
  %19 = vst [vmem:[#allocation4] sm:$0x1] %v18
  $region1: #{tpu_custom_call.1} parent=0
    #allocation5 [shape = 'u8[4096]{0}', space=vmem, size = 0x1000, scoped, tag = 'input window, operand 1, single buffered']
    #allocation6 [shape = 's32[1]{0}', space=sflag, size = 0x4, scoped, tag = 'scoped memory for tpu_custom_call.1']
    #allocation7 [shape = 'u8[8192]{0}', space=vmem, size = 0x2000, scoped, tag = 'input window, operand 2, single buffered']
    #allocation8 [shape = 's32[1]{0}', space=sflag, size = 0x4, scoped, tag = 'scoped memory for tpu_custom_call.1']
    #allocation9 [shape = 'u8[16384]{0}', space=vmem, size = 0x4000, scoped, tag = 'input window, operand 6, single buffered']
    #allocation10 [shape = 'u8[512]{0}', space=vmem, size = 0x400, scoped, tag = 'input window, operand 7, single buffered']
    #allocation11 [shape = 's32[1]{0}', space=sflag, size = 0x4, scoped, tag = 'scoped memory for tpu_custom_call.1']
    #allocation12 [shape = 'u8[16384]{0}', space=vmem, size = 0x4000, scoped, tag = 'input window, operand 8, single buffered']
    %20 = vsyncpa [#allocation6], 0
    %21 = vsyncpa [#allocation8], 0
    %22 = vsyncpa [#allocation11], 0
    // Predicated region
    $region2: #{tpu_custom_call.1} parent=1 // pred_check
      _
    $region3: #{tpu_custom_call.1} parent=1 // pred_check_branch
      %24 = sbr.rel (0) target = $region5
    $region4: #{tpu_custom_call.1} parent=1 // pred_region
      _
    $region5: #{tpu_custom_call.1} parent=1 // pred_fallthru
      _
    // Predicated region
    $region6: #{tpu_custom_call.1} parent=1 // pred_check
      _
    $region7: #{tpu_custom_call.1} parent=1 // pred_check_branch
      %26 = sbr.rel (0) target = $region9
    $region8: #{tpu_custom_call.1} parent=1 // pred_region
      %28 = vsyncadd [#allocation6], 0
      %s30 = sshll.u32 %s1, 4
      %s31 = int_to_ptr.hbm [resolvable:$true] %s30
      %s32 = sshll.u32 [#allocation5], 4
      %s33 = int_to_ptr.vmem [resolvable:$true] %s32
      %35 = dma.hbm_to_vmem [thread:$0]  %s31, 128, %s33, [#allocation6]
    $region9: #{tpu_custom_call.1} parent=1 // pred_fallthru
      _
    // Predicated region
    $region10: #{tpu_custom_call.1} parent=1 // pred_check
      _
    $region11: #{tpu_custom_call.1} parent=1 // pred_check_branch
      %37 = sbr.rel (0) target = $region13
    $region12: #{tpu_custom_call.1} parent=1 // pred_region
      %39 = vsyncadd [#allocation8], 0
      %s40 = sshll.u32 %s2, 4
      %s41 = int_to_ptr.hbm [resolvable:$true] %s40
      %s42 = sshll.u32 [#allocation7], 4
      %s43 = int_to_ptr.vmem [resolvable:$true] %s42
      %48 = dma.hbm_to_vmem [thread:$0]  %s41, 256, %s43, [#allocation8], 128, 128, 8
    $region13: #{tpu_custom_call.1} parent=1 // pred_fallthru
      _
    // Predicated region
    $region14: #{tpu_custom_call.1} parent=1 // pred_check
      _
    $region15: #{tpu_custom_call.1} parent=1 // pred_check_branch
      %50 = sbr.rel (0) target = $region17
    $region16: #{tpu_custom_call.1} parent=1 // pred_region
      _
    $region17: #{tpu_custom_call.1} parent=1 // pred_fallthru
      _
    // Predicated region
    $region18: #{tpu_custom_call.1} parent=1 // pred_check
      _
    $region19: #{tpu_custom_call.1} parent=1 // pred_check_branch
      %52 = sbr.rel (0) target = $region21
    $region20: #{tpu_custom_call.1} parent=1 // pred_region
      _
    $region21: #{tpu_custom_call.1} parent=1 // pred_fallthru
      _
    // Predicated region
    $region22: #{tpu_custom_call.1} parent=1 // pred_check
      _
    $region23: #{tpu_custom_call.1} parent=1 // pred_check_branch
      %54 = sbr.rel (0) target = $region25
    $region24: #{tpu_custom_call.1} parent=1 // pred_region
      _
    $region25: #{tpu_custom_call.1} parent=1 // pred_fallthru
      _
    // Predicated region
    $region26: #{tpu_custom_call.1} parent=1 // pred_check
      _
    $region27: #{tpu_custom_call.1} parent=1 // pred_check_branch
      %56 = sbr.rel (0) target = $region29
    $region28: #{tpu_custom_call.1} parent=1 // pred_region
      %58 = vsyncadd [#allocation8], 0
      %s59 = sshll.u32 %s6, 4
      %s60 = int_to_ptr.hbm [resolvable:$true] %s59
      %s61 = sshll.u32 [#allocation9], 4
      %s62 = int_to_ptr.vmem [resolvable:$true] %s61
      %67 = dma.hbm_to_vmem [thread:$0]  %s60, 512, %s62, [#allocation8], 128, 128, 8
    $region29: #{tpu_custom_call.1} parent=1 // pred_fallthru
      _
    // Predicated region
    $region30: #{tpu_custom_call.1} parent=1 // pred_check
      _
    $region31: #{tpu_custom_call.1} parent=1 // pred_check_branch
      %69 = sbr.rel (0) target = $region33
    $region32: #{tpu_custom_call.1} parent=1 // pred_region
      %71 = vsyncadd [#allocation11], 0
      %s73 = sshll.u32 %s7, 4
      %s74 = int_to_ptr.hbm [resolvable:$true] %s73
      %s75 = sshll.u32 [#allocation10], 4
      %s76 = int_to_ptr.vmem [resolvable:$true] %s75
      %78 = dma.hbm_to_vmem [thread:$0]  %s74, 16, %s76, [#allocation11]
    $region33: #{tpu_custom_call.1} parent=1 // pred_fallthru
      _
    // Predicated region
    $region34: #{tpu_custom_call.1} parent=1 // pred_check
      _
    $region35: #{tpu_custom_call.1} parent=1 // pred_check_branch
      %80 = sbr.rel (0) target = $region37
    $region36: #{tpu_custom_call.1} parent=1 // pred_region
      %82 = vsyncadd [#allocation11], 0
      %s83 = sshll.u32 %s8, 4
      %s84 = int_to_ptr.hbm [resolvable:$true] %s83
      %s85 = sshll.u32 [#allocation12], 4
      %s86 = int_to_ptr.vmem [resolvable:$true] %s85
      %91 = dma.hbm_to_vmem [thread:$0]  %s84, 512, %s86, [#allocation11], 128, 128, 8
    $region37: #{tpu_custom_call.1} parent=1 // pred_fallthru
      _
    // Predicated region
    $region38: #{tpu_custom_call.1} parent=1 // pred_check
      _
    $region39: #{tpu_custom_call.1} parent=1 // pred_check_branch
      %93 = sbr.rel (0) target = $region41
    $region40: #{tpu_custom_call.1} parent=1 // pred_region
      _
    $region41: #{tpu_custom_call.1} parent=1 // pred_fallthru
      _
    // Predicated region
    $region42: #{tpu_custom_call.1} parent=1 // pred_check
      _
    $region43: #{tpu_custom_call.1} parent=1 // pred_check_branch
      %95 = sbr.rel (0) target = $region45
    $region44: #{tpu_custom_call.1} parent=1 // pred_region
      _
    $region45: #{tpu_custom_call.1} parent=1 // pred_fallthru
      _
    // Predicated region
    $region46: #{tpu_custom_call.1} parent=1 // pred_check
      _
    $region47: #{tpu_custom_call.1} parent=1 // pred_check_branch
      %97 = sbr.rel (0) target = $region49
    $region48: #{tpu_custom_call.1} parent=1 // pred_region
      _
    $region49: #{tpu_custom_call.1} parent=1 // pred_fallthru
      _
    // Predicated region
    $region50: #{tpu_custom_call.1} parent=1 // pred_check
      _
    $region51: #{tpu_custom_call.1} parent=1 // pred_check_branch
      %99 = sbr.rel (0) target = $region53
    $region52: #{tpu_custom_call.1} parent=1 // pred_region
      _
    $region53: #{tpu_custom_call.1} parent=1 // pred_fallthru
      _
    // Predicated region
    $region54: #{tpu_custom_call.1} parent=1 // pred_check
      _
    $region55: #{tpu_custom_call.1} parent=1 // pred_check_branch
      %101 = sbr.rel (0) target = $region57
    $region56: #{tpu_custom_call.1} parent=1 // pred_region
      %103 = dma.done [#allocation6], 128
    $region57: #{tpu_custom_call.1} parent=1 // pred_fallthru
      _
    // Predicated region
    $region58: #{tpu_custom_call.1} parent=1 // pred_check
      _
    $region59: #{tpu_custom_call.1} parent=1 // pred_check_branch
      %105 = sbr.rel (0) target = $region61
    $region60: #{tpu_custom_call.1} parent=1 // pred_region
      %107 = dma.done [#allocation8], 256
    $region61: #{tpu_custom_call.1} parent=1 // pred_fallthru
      _
    // Predicated region
    $region62: #{tpu_custom_call.1} parent=1 // pred_check
      _
    $region63: #{tpu_custom_call.1} parent=1 // pred_check_branch
      %109 = sbr.rel (0) target = $region65
    $region64: #{tpu_custom_call.1} parent=1 // pred_region
      %111 = dma.done [#allocation8], 512
    $region65: #{tpu_custom_call.1} parent=1 // pred_fallthru
      _
    // Predicated region
    $region66: #{tpu_custom_call.1} parent=1 // pred_check
      _
    $region67: #{tpu_custom_call.1} parent=1 // pred_check_branch
      %113 = sbr.rel (0) target = $region69
    $region68: #{tpu_custom_call.1} parent=1 // pred_region
      %115 = dma.done [#allocation11], 16
    $region69: #{tpu_custom_call.1} parent=1 // pred_fallthru
      _
    // Predicated region
    $region70: #{tpu_custom_call.1} parent=1 // pred_check
      _
    $region71: #{tpu_custom_call.1} parent=1 // pred_check_branch
      %117 = sbr.rel (0) target = $region73
    $region72: #{tpu_custom_call.1} parent=1 // pred_region
      %119 = dma.done [#allocation11], 512
    $region73: #{tpu_custom_call.1} parent=1 // pred_fallthru
      _
    %v120 = vld [vmem:[#allocation7] sm:$0xff]
    %v121 = vld [vmem:[#allocation7 + $0x8] sm:$0xff]
    %v122 = vld [vmem:[%s3] sm:$0xff]
    %v123 = vld [vmem:[%s3 + $0x8] sm:$0xff]
    %v124 = vld [vmem:[%s3 + $0x10] sm:$0xff]
    %v125 = vld [vmem:[%s3 + $0x18] sm:$0xff]
    %v126 = vld [vmem:[%s4] sm:$0x1]
    %v127 = vld [vmem:[%s0] sm:$0xff]
    %v128 = vld [vmem:[%s0 + $0x8] sm:$0xff]
    %v129 = vld [vmem:[%s0 + $0x10] sm:$0xff]
    %v130 = vld [vmem:[%s0 + $0x18] sm:$0xff]
    %v131 = vld [vmem:[%s0 + $0x20] sm:$0xff]
    %v132 = vld [vmem:[%s0 + $0x28] sm:$0xff]
    %v133 = vld [vmem:[%s0 + $0x30] sm:$0xff]
    %v134 = vld [vmem:[%s0 + $0x38] sm:$0xff]
    %v136 = vperm.slane %v126, 0
    %vm138 = vcmask 130048
    %v140 = vsel %vm138, %v127, 0
    %v143 = vsel %vm138, %v128, 0
    %v146 = vsel %vm138, %v129, 0
    %v149 = vsel %vm138, %v130, 0
    %v152 = vsel %vm138, %v131, 0
    %v155 = vsel %vm138, %v132, 0
    %v158 = vsel %vm138, %v133, 0
    %v161 = vsel %vm138, %v134, 0
    %163 = vmatpush.msra.mxu0 0.0
    %164 = vmatpush.msra.mxu0 0.0
    %165 = vmatpush.msra.mxu0 0.0
    %166 = vmatpush.msra.mxu0 0.0
    %167 = vmatpush.msra.mxu0 0.0
    %168 = vmatpush.msra.mxu0 0.0
    %169 = vmatpush.msra.mxu0 0.0
    %170 = vmatpush.msra.mxu0 0.0
    %171 = vmatpush.msra.mxu0 0.0
    %172 = vmatpush.msra.mxu0 0.0
    %173 = vmatpush.msra.mxu0 0.0
    %174 = vmatpush.msra.mxu0 0.0
    %175 = vmatpush.msra.mxu0 0.0
    %176 = vmatpush.msra.mxu0 0.0
    %177 = vmatpush.msra.mxu0 %v121
    %178 = vmatpush.msra.mxu0 %v120
    %179 = vmatmul.f32.gmra.mxu0 %v140
    %v180 = vpop.f32.mrf.mxu0
    %v181 = vadd.f32 %v136, %v180
    %182 = vmatmul.f32.gmra.mxu0 %v143
    %v183 = vpop.f32.mrf.mxu0
    %v184 = vadd.f32 %v136, %v183
    %185 = vmatmul.f32.gmra.mxu0 %v146
    %v186 = vpop.f32.mrf.mxu0
    %v187 = vadd.f32 %v136, %v186
    %188 = vmatmul.f32.gmra.mxu0 %v149
    %v189 = vpop.f32.mrf.mxu0
    %v190 = vadd.f32 %v136, %v189
    %191 = vmatmul.f32.gmra.mxu0 %v152
    %v192 = vpop.f32.mrf.mxu0
    %v193 = vadd.f32 %v136, %v192
    %194 = vmatmul.f32.gmra.mxu0 %v155
    %v195 = vpop.f32.mrf.mxu0
    %v196 = vadd.f32 %v136, %v195
    %197 = vmatmul.f32.gmra.mxu0 %v158
    %v198 = vpop.f32.mrf.mxu0
    %v199 = vadd.f32 %v136, %v198
    %200 = vmatmul.f32.gmra.mxu0 %v161
    %v201 = vpop.f32.mrf.mxu0
    %v202 = vadd.f32 %v136, %v201
    %203 = vdwg.mxu0
    %204 = vst [vmem:[#allocation3] sm:$0xff] %v181
    %205 = vst [vmem:[#allocation3 + $0x8] sm:$0xff] %v184
    %206 = vst [vmem:[#allocation3 + $0x10] sm:$0xff] %v187
    %207 = vst [vmem:[#allocation3 + $0x18] sm:$0xff] %v190
    %208 = vst [vmem:[#allocation3 + $0x20] sm:$0xff] %v193
    %209 = vst [vmem:[#allocation3 + $0x28] sm:$0xff] %v196
    %210 = vst [vmem:[#allocation3 + $0x30] sm:$0xff] %v199
    %211 = vst [vmem:[#allocation3 + $0x38] sm:$0xff] %v202
    %v212 = vld [vmem:[#allocation3] sm:$0xff]
    %vm213 = vcmask 261120
    %v215 = vsel %vm213, 0.0, 0
    %217 = vmatpush.msra.mxu0 0.0
    %218 = vmatpush.msra.mxu0 0.0
    %219 = vmatpush.msra.mxu0 0.0
    %220 = vmatpush.msra.mxu0 0.0
    %221 = vmatpush.msra.mxu0 0.0
    %222 = vmatpush.msra.mxu0 0.0
    %223 = vmatpush.msra.mxu0 0.0
    %224 = vmatpush.msra.mxu0 0.0
    %225 = vmatpush.msra.mxu0 0.0
    %226 = vmatpush.msra.mxu0 0.0
    %227 = vmatpush.msra.mxu0 0.0
    %228 = vmatpush.msra.mxu0 0.0
    %229 = vmatpush.msra.mxu0 %v125
    %230 = vmatpush.msra.mxu0 %v124
    %231 = vmatpush.msra.mxu0 %v123
    %232 = vmatpush.msra.mxu0 %v122
    %233 = vmatmul.f32.gmra.mxu0 %v215
    %v234 = vpop.f32.mrf.mxu0
    %v235 = vadd.f32 0.0, %v234
    %236 = vdwg.mxu0
    %v237 = vadd.f32 %v212, %v235
    %v238 = vtanh.pop %v237
    %v239 = vadd.f32 %v238, 1.0
    %v240 = vmul.f32 %v239, 0.5
    %v241 = vmul.f32 %v240, 0.0
    %243 = vrot.lane.b32.xlu0 %v238, 32
    %v244 = vpop.permute.xlu0 %243
    %v246 = vmul.f32 %v240, %v244
    %248 = vrot.lane.b32.xlu0 %v246, 32
    %v249 = vpop.permute.xlu0 %248
    %v251 = vadd.f32 %v241, %v249
    %v252 = vtanh.pop %v251
    %254 = vrot.lane.b32.xlu0 %v252, 32
    %v255 = vpop.permute.xlu0 %254
    %v257 = vmul.f32 %v240, %v255
    %259 = vrot.lane.b32.xlu0 %v257, 64
    %v260 = vpop.permute.xlu0 %259
    %262 = vst.msk [vmem:[#allocation2] sm:$0xff] %vm213, %v260
    %s263 = scalar_lea.vmem [#allocation3], 8
    %v264 = vld [vmem:[%s263] sm:$0xff]
    %v265 = vsel %vm213, %v260, 0
    %267 = vmatpush.msra.mxu0 0.0
    %268 = vmatpush.msra.mxu0 0.0
    %269 = vmatpush.msra.mxu0 0.0
    %270 = vmatpush.msra.mxu0 0.0
    %271 = vmatpush.msra.mxu0 0.0
    %272 = vmatpush.msra.mxu0 0.0
    %273 = vmatpush.msra.mxu0 0.0
    %274 = vmatpush.msra.mxu0 0.0
    %275 = vmatpush.msra.mxu0 0.0
    %276 = vmatpush.msra.mxu0 0.0
    %277 = vmatpush.msra.mxu0 0.0
    %278 = vmatpush.msra.mxu0 0.0
    %279 = vmatpush.msra.mxu0 %v125
    %280 = vmatpush.msra.mxu0 %v124
    %281 = vmatpush.msra.mxu0 %v123
    %282 = vmatpush.msra.mxu0 %v122
    %283 = vmatmul.f32.gmra.mxu0 %v265
    %v284 = vpop.f32.mrf.mxu0
    %v285 = vadd.f32 0.0, %v284
    %286 = vdwg.mxu0
    %v287 = vadd.f32 %v264, %v285
    %v288 = vtanh.pop %v287
    %v289 = vadd.f32 %v288, 1.0
    %v290 = vmul.f32 %v289, 0.5
    %v291 = vmul.f32 %v290, %v251
    %293 = vrot.lane.b32.xlu0 %v288, 32
    %v294 = vpop.permute.xlu0 %293
    %v296 = vmul.f32 %v290, %v294
    %298 = vrot.lane.b32.xlu0 %v296, 32
    %v299 = vpop.permute.xlu0 %298
    %v301 = vadd.f32 %v291, %v299
    %v302 = vtanh.pop %v301
    %304 = vrot.lane.b32.xlu0 %v302, 32
    %v305 = vpop.permute.xlu0 %304
    %v307 = vmul.f32 %v290, %v305
    %309 = vrot.lane.b32.xlu0 %v307, 64
    %v310 = vpop.permute.xlu0 %309
    %s312 = scalar_lea.vmem [#allocation2], 8
    %313 = vst.msk [vmem:[%s312] sm:$0xff] %vm213, %v310
    %s314 = scalar_lea.vmem [#allocation3], 16
    %v315 = vld [vmem:[%s314] sm:$0xff]
    %v316 = vsel %vm213, %v310, 0
    %318 = vmatpush.msra.mxu0 0.0
    %319 = vmatpush.msra.mxu0 0.0
    %320 = vmatpush.msra.mxu0 0.0
    %321 = vmatpush.msra.mxu0 0.0
    %322 = vmatpush.msra.mxu0 0.0
    %323 = vmatpush.msra.mxu0 0.0
    %324 = vmatpush.msra.mxu0 0.0
    %325 = vmatpush.msra.mxu0 0.0
    %326 = vmatpush.msra.mxu0 0.0
    %327 = vmatpush.msra.mxu0 0.0
    %328 = vmatpush.msra.mxu0 0.0
    %329 = vmatpush.msra.mxu0 0.0
    %330 = vmatpush.msra.mxu0 %v125
    %331 = vmatpush.msra.mxu0 %v124
    %332 = vmatpush.msra.mxu0 %v123
    %333 = vmatpush.msra.mxu0 %v122
    %334 = vmatmul.f32.gmra.mxu0 %v316
    %v335 = vpop.f32.mrf.mxu0
    %v336 = vadd.f32 0.0, %v335
    %337 = vdwg.mxu0
    %v338 = vadd.f32 %v315, %v336
    %v339 = vtanh.pop %v338
    %v340 = vadd.f32 %v339, 1.0
    %v341 = vmul.f32 %v340, 0.5
    %v342 = vmul.f32 %v341, %v301
    %344 = vrot.lane.b32.xlu0 %v339, 32
    %v345 = vpop.permute.xlu0 %344
    %v347 = vmul.f32 %v341, %v345
    %349 = vrot.lane.b32.xlu0 %v347, 32
    %v350 = vpop.permute.xlu0 %349
    %v352 = vadd.f32 %v342, %v350
    %v353 = vtanh.pop %v352
    %355 = vrot.lane.b32.xlu0 %v353, 32
    %v356 = vpop.permute.xlu0 %355
    %v358 = vmul.f32 %v341, %v356
    %360 = vrot.lane.b32.xlu0 %v358, 64
    %v361 = vpop.permute.xlu0 %360
    %s363 = scalar_lea.vmem [#allocation2], 16
    %364 = vst.msk [vmem:[%s363] sm:$0xff] %vm213, %v361
    %s365 = scalar_lea.vmem [#allocation3], 24
    %v366 = vld [vmem:[%s365] sm:$0xff]
    %v367 = vsel %vm213, %v361, 0
    %369 = vmatpush.msra.mxu0 0.0
    %370 = vmatpush.msra.mxu0 0.0
    %371 = vmatpush.msra.mxu0 0.0
    %372 = vmatpush.msra.mxu0 0.0
    %373 = vmatpush.msra.mxu0 0.0
    %374 = vmatpush.msra.mxu0 0.0
    %375 = vmatpush.msra.mxu0 0.0
    %376 = vmatpush.msra.mxu0 0.0
    %377 = vmatpush.msra.mxu0 0.0
    %378 = vmatpush.msra.mxu0 0.0
    %379 = vmatpush.msra.mxu0 0.0
    %380 = vmatpush.msra.mxu0 0.0
    %381 = vmatpush.msra.mxu0 %v125
    %382 = vmatpush.msra.mxu0 %v124
    %383 = vmatpush.msra.mxu0 %v123
    %384 = vmatpush.msra.mxu0 %v122
    %385 = vmatmul.f32.gmra.mxu0 %v367
    %v386 = vpop.f32.mrf.mxu0
    %v387 = vadd.f32 0.0, %v386
    %388 = vdwg.mxu0
    %v389 = vadd.f32 %v366, %v387
    %v390 = vtanh.pop %v389
    %v391 = vadd.f32 %v390, 1.0
    %v392 = vmul.f32 %v391, 0.5
    %v393 = vmul.f32 %v392, %v352
    %395 = vrot.lane.b32.xlu0 %v390, 32
    %v396 = vpop.permute.xlu0 %395
    %v398 = vmul.f32 %v392, %v396
    %400 = vrot.lane.b32.xlu0 %v398, 32
    %v401 = vpop.permute.xlu0 %400
    %v403 = vadd.f32 %v393, %v401
    %v404 = vtanh.pop %v403
    %406 = vrot.lane.b32.xlu0 %v404, 32
    %v407 = vpop.permute.xlu0 %406
    %v409 = vmul.f32 %v392, %v407
    %411 = vrot.lane.b32.xlu0 %v409, 64
    %v412 = vpop.permute.xlu0 %411
    %s414 = scalar_lea.vmem [#allocation2], 24
    %415 = vst.msk [vmem:[%s414] sm:$0xff] %vm213, %v412
    %s416 = scalar_lea.vmem [#allocation3], 32
    %v417 = vld [vmem:[%s416] sm:$0xff]
    %v418 = vsel %vm213, %v412, 0
    %420 = vmatpush.msra.mxu0 0.0
    %421 = vmatpush.msra.mxu0 0.0
    %422 = vmatpush.msra.mxu0 0.0
    %423 = vmatpush.msra.mxu0 0.0
    %424 = vmatpush.msra.mxu0 0.0
    %425 = vmatpush.msra.mxu0 0.0
    %426 = vmatpush.msra.mxu0 0.0
    %427 = vmatpush.msra.mxu0 0.0
    %428 = vmatpush.msra.mxu0 0.0
    %429 = vmatpush.msra.mxu0 0.0
    %430 = vmatpush.msra.mxu0 0.0
    %431 = vmatpush.msra.mxu0 0.0
    %432 = vmatpush.msra.mxu0 %v125
    %433 = vmatpush.msra.mxu0 %v124
    %434 = vmatpush.msra.mxu0 %v123
    %435 = vmatpush.msra.mxu0 %v122
    %436 = vmatmul.f32.gmra.mxu0 %v418
    %v437 = vpop.f32.mrf.mxu0
    %v438 = vadd.f32 0.0, %v437
    %439 = vdwg.mxu0
    %v440 = vadd.f32 %v417, %v438
    %v441 = vtanh.pop %v440
    %v442 = vadd.f32 %v441, 1.0
    %v443 = vmul.f32 %v442, 0.5
    %v444 = vmul.f32 %v443, %v403
    %446 = vrot.lane.b32.xlu0 %v441, 32
    %v447 = vpop.permute.xlu0 %446
    %v449 = vmul.f32 %v443, %v447
    %451 = vrot.lane.b32.xlu0 %v449, 32
    %v452 = vpop.permute.xlu0 %451
    %v454 = vadd.f32 %v444, %v452
    %v455 = vtanh.pop %v454
    %457 = vrot.lane.b32.xlu0 %v455, 32
    %v458 = vpop.permute.xlu0 %457
    %v460 = vmul.f32 %v443, %v458
    %462 = vrot.lane.b32.xlu0 %v460, 64
    %v463 = vpop.permute.xlu0 %462
    %s465 = scalar_lea.vmem [#allocation2], 32
    %466 = vst.msk [vmem:[%s465] sm:$0xff] %vm213, %v463
    %s467 = scalar_lea.vmem [#allocation3], 40
    %v468 = vld [vmem:[%s467] sm:$0xff]
    %v469 = vsel %vm213, %v463, 0
    %471 = vmatpush.msra.mxu0 0.0
    %472 = vmatpush.msra.mxu0 0.0
    %473 = vmatpush.msra.mxu0 0.0
    %474 = vmatpush.msra.mxu0 0.0
    %475 = vmatpush.msra.mxu0 0.0
    %476 = vmatpush.msra.mxu0 0.0
    %477 = vmatpush.msra.mxu0 0.0
    %478 = vmatpush.msra.mxu0 0.0
    %479 = vmatpush.msra.mxu0 0.0
    %480 = vmatpush.msra.mxu0 0.0
    %481 = vmatpush.msra.mxu0 0.0
    %482 = vmatpush.msra.mxu0 0.0
    %483 = vmatpush.msra.mxu0 %v125
    %484 = vmatpush.msra.mxu0 %v124
    %485 = vmatpush.msra.mxu0 %v123
    %486 = vmatpush.msra.mxu0 %v122
    %487 = vmatmul.f32.gmra.mxu0 %v469
    %v488 = vpop.f32.mrf.mxu0
    %v489 = vadd.f32 0.0, %v488
    %490 = vdwg.mxu0
    %v491 = vadd.f32 %v468, %v489
    %v492 = vtanh.pop %v491
    %v493 = vadd.f32 %v492, 1.0
    %v494 = vmul.f32 %v493, 0.5
    %v495 = vmul.f32 %v494, %v454
    %497 = vrot.lane.b32.xlu0 %v492, 32
    %v498 = vpop.permute.xlu0 %497
    %v500 = vmul.f32 %v494, %v498
    %502 = vrot.lane.b32.xlu0 %v500, 32
    %v503 = vpop.permute.xlu0 %502
    %v505 = vadd.f32 %v495, %v503
    %v506 = vtanh.pop %v505
    %508 = vrot.lane.b32.xlu0 %v506, 32
    %v509 = vpop.permute.xlu0 %508
    %v511 = vmul.f32 %v494, %v509
    %513 = vrot.lane.b32.xlu0 %v511, 64
    %v514 = vpop.permute.xlu0 %513
    %s516 = scalar_lea.vmem [#allocation2], 40
    %517 = vst.msk [vmem:[%s516] sm:$0xff] %vm213, %v514
    %s518 = scalar_lea.vmem [#allocation3], 48
    %v519 = vld [vmem:[%s518] sm:$0xff]
    %v520 = vsel %vm213, %v514, 0
    %522 = vmatpush.msra.mxu0 0.0
    %523 = vmatpush.msra.mxu0 0.0
    %524 = vmatpush.msra.mxu0 0.0
    %525 = vmatpush.msra.mxu0 0.0
    %526 = vmatpush.msra.mxu0 0.0
    %527 = vmatpush.msra.mxu0 0.0
    %528 = vmatpush.msra.mxu0 0.0
    %529 = vmatpush.msra.mxu0 0.0
    %530 = vmatpush.msra.mxu0 0.0
    %531 = vmatpush.msra.mxu0 0.0
    %532 = vmatpush.msra.mxu0 0.0
    %533 = vmatpush.msra.mxu0 0.0
    %534 = vmatpush.msra.mxu0 %v125
    %535 = vmatpush.msra.mxu0 %v124
    %536 = vmatpush.msra.mxu0 %v123
    %537 = vmatpush.msra.mxu0 %v122
    %538 = vmatmul.f32.gmra.mxu0 %v520
    %v539 = vpop.f32.mrf.mxu0
    %v540 = vadd.f32 0.0, %v539
    %541 = vdwg.mxu0
    %v542 = vadd.f32 %v519, %v540
    %v543 = vtanh.pop %v542
    %v544 = vadd.f32 %v543, 1.0
    %v545 = vmul.f32 %v544, 0.5
    %v546 = vmul.f32 %v545, %v505
    %548 = vrot.lane.b32.xlu0 %v543, 32
    %v549 = vpop.permute.xlu0 %548
    %v551 = vmul.f32 %v545, %v549
    %553 = vrot.lane.b32.xlu0 %v551, 32
    %v554 = vpop.permute.xlu0 %553
    %v556 = vadd.f32 %v546, %v554
    %v557 = vtanh.pop %v556
    %559 = vrot.lane.b32.xlu0 %v557, 32
    %v560 = vpop.permute.xlu0 %559
    %v562 = vmul.f32 %v545, %v560
    %564 = vrot.lane.b32.xlu0 %v562, 64
    %v565 = vpop.permute.xlu0 %564
    %s567 = scalar_lea.vmem [#allocation2], 48
    %568 = vst.msk [vmem:[%s567] sm:$0xff] %vm213, %v565
    %s569 = scalar_lea.vmem [#allocation3], 56
    %v570 = vld [vmem:[%s569] sm:$0xff]
    %v571 = vsel %vm213, %v565, 0
    %573 = vmatpush.msra.mxu0 0.0
    %574 = vmatpush.msra.mxu0 0.0
    %575 = vmatpush.msra.mxu0 0.0
    %576 = vmatpush.msra.mxu0 0.0
    %577 = vmatpush.msra.mxu0 0.0
    %578 = vmatpush.msra.mxu0 0.0
    %579 = vmatpush.msra.mxu0 0.0
    %580 = vmatpush.msra.mxu0 0.0
    %581 = vmatpush.msra.mxu0 0.0
    %582 = vmatpush.msra.mxu0 0.0
    %583 = vmatpush.msra.mxu0 0.0
    %584 = vmatpush.msra.mxu0 0.0
    %585 = vmatpush.msra.mxu0 %v125
    %586 = vmatpush.msra.mxu0 %v124
    %587 = vmatpush.msra.mxu0 %v123
    %588 = vmatpush.msra.mxu0 %v122
    %589 = vmatmul.f32.gmra.mxu0 %v571
    %v590 = vpop.f32.mrf.mxu0
    %v591 = vadd.f32 0.0, %v590
    %592 = vdwg.mxu0
    %v593 = vadd.f32 %v570, %v591
    %v594 = vtanh.pop %v593
    %v595 = vadd.f32 %v594, 1.0
    %v596 = vmul.f32 %v595, 0.5
    %v597 = vmul.f32 %v596, %v556
    %599 = vrot.lane.b32.xlu0 %v594, 32
    %v600 = vpop.permute.xlu0 %599
    %v602 = vmul.f32 %v596, %v600
    %604 = vrot.lane.b32.xlu0 %v602, 32
    %v605 = vpop.permute.xlu0 %604
    %v607 = vadd.f32 %v597, %v605
    %v608 = vtanh.pop %v607
    %610 = vrot.lane.b32.xlu0 %v608, 32
    %v611 = vpop.permute.xlu0 %610
    %v613 = vmul.f32 %v596, %v611
    %615 = vrot.lane.b32.xlu0 %v613, 64
    %v616 = vpop.permute.xlu0 %615
    %s618 = scalar_lea.vmem [#allocation2], 56
    %619 = vst.msk [vmem:[%s618] sm:$0xff] %vm213, %v616
    %v620 = vld [vmem:[%s5] sm:$0xff]
    %v621 = vld [vmem:[%s5 + $0x8] sm:$0xff]
    %v622 = vld [vmem:[%s5 + $0x10] sm:$0xff]
    %v623 = vld [vmem:[%s5 + $0x18] sm:$0xff]
    %v624 = vld [vmem:[#allocation9] sm:$0xff]
    %v625 = vld [vmem:[#allocation9 + $0x8] sm:$0xff]
    %v626 = vld [vmem:[#allocation9 + $0x10] sm:$0xff]
    %v627 = vld [vmem:[#allocation9 + $0x18] sm:$0xff]
    %v628 = vld [vmem:[#allocation10] sm:$0x1]
    %v629 = vld [vmem:[#allocation2] sm:$0xff]
    %v630 = vld [vmem:[#allocation2 + $0x8] sm:$0xff]
    %v631 = vld [vmem:[#allocation2 + $0x10] sm:$0xff]
    %v632 = vld [vmem:[#allocation2 + $0x18] sm:$0xff]
    %v633 = vld [vmem:[#allocation2 + $0x20] sm:$0xff]
    %v634 = vld [vmem:[#allocation2 + $0x28] sm:$0xff]
    %v635 = vld [vmem:[#allocation2 + $0x30] sm:$0xff]
    %v636 = vld [vmem:[#allocation2 + $0x38] sm:$0xff]
    %v638 = vperm.slane %v628, 0
    %v641 = vsel %vm213, %v629, 0
    %v644 = vsel %vm213, %v630, 0
    %v647 = vsel %vm213, %v631, 0
    %v650 = vsel %vm213, %v632, 0
    %v653 = vsel %vm213, %v633, 0
    %v656 = vsel %vm213, %v634, 0
    %v659 = vsel %vm213, %v635, 0
    %v662 = vsel %vm213, %v636, 0
    %664 = vmatpush.msra.mxu0 0.0
    %665 = vmatpush.msra.mxu0 0.0
    %666 = vmatpush.msra.mxu0 0.0
    %667 = vmatpush.msra.mxu0 0.0
    %668 = vmatpush.msra.mxu0 0.0
    %669 = vmatpush.msra.mxu0 0.0
    %670 = vmatpush.msra.mxu0 0.0
    %671 = vmatpush.msra.mxu0 0.0
    %672 = vmatpush.msra.mxu0 0.0
    %673 = vmatpush.msra.mxu0 0.0
    %674 = vmatpush.msra.mxu0 0.0
    %675 = vmatpush.msra.mxu0 0.0
    %676 = vmatpush.msra.mxu0 %v623
    %677 = vmatpush.msra.mxu0 %v622
    %678 = vmatpush.msra.mxu0 %v621
    %679 = vmatpush.msra.mxu0 %v620
    %680 = vmatmul.f32.gmra.mxu0 %v641
    %v681 = vpop.f32.mrf.mxu0
    %v682 = vadd.f32 %v638, %v681
    %683 = vmatmul.f32.gmra.mxu0 %v644
    %v684 = vpop.f32.mrf.mxu0
    %v685 = vadd.f32 %v638, %v684
    %686 = vmatmul.f32.gmra.mxu0 %v647
    %v687 = vpop.f32.mrf.mxu0
    %v688 = vadd.f32 %v638, %v687
    %689 = vmatmul.f32.gmra.mxu0 %v650
    %v690 = vpop.f32.mrf.mxu0
    %v691 = vadd.f32 %v638, %v690
    %692 = vmatmul.f32.gmra.mxu0 %v653
    %v693 = vpop.f32.mrf.mxu0
    %v694 = vadd.f32 %v638, %v693
    %695 = vmatmul.f32.gmra.mxu0 %v656
    %v696 = vpop.f32.mrf.mxu0
    %v697 = vadd.f32 %v638, %v696
    %698 = vmatmul.f32.gmra.mxu0 %v659
    %v699 = vpop.f32.mrf.mxu0
    %v700 = vadd.f32 %v638, %v699
    %701 = vmatmul.f32.gmra.mxu0 %v662
    %v702 = vpop.f32.mrf.mxu0
    %v703 = vadd.f32 %v638, %v702
    %704 = vdwg.mxu0
    %705 = vst [vmem:[#allocation3] sm:$0xff] %v682
    %706 = vst [vmem:[#allocation3 + $0x8] sm:$0xff] %v685
    %707 = vst [vmem:[#allocation3 + $0x10] sm:$0xff] %v688
    %708 = vst [vmem:[#allocation3 + $0x18] sm:$0xff] %v691
    %709 = vst [vmem:[#allocation3 + $0x20] sm:$0xff] %v694
    %710 = vst [vmem:[#allocation3 + $0x28] sm:$0xff] %v697
    %711 = vst [vmem:[#allocation3 + $0x30] sm:$0xff] %v700
    %712 = vst [vmem:[#allocation3 + $0x38] sm:$0xff] %v703
    %v713 = vld [vmem:[#allocation3] sm:$0xff]
    %714 = vmatpush.msra.mxu0 0.0
    %715 = vmatpush.msra.mxu0 0.0
    %716 = vmatpush.msra.mxu0 0.0
    %717 = vmatpush.msra.mxu0 0.0
    %718 = vmatpush.msra.mxu0 0.0
    %719 = vmatpush.msra.mxu0 0.0
    %720 = vmatpush.msra.mxu0 0.0
    %721 = vmatpush.msra.mxu0 0.0
    %722 = vmatpush.msra.mxu0 0.0
    %723 = vmatpush.msra.mxu0 0.0
    %724 = vmatpush.msra.mxu0 0.0
    %725 = vmatpush.msra.mxu0 0.0
    %726 = vmatpush.msra.mxu0 %v627
    %727 = vmatpush.msra.mxu0 %v626
    %728 = vmatpush.msra.mxu0 %v625
    %729 = vmatpush.msra.mxu0 %v624
    %730 = vmatmul.f32.gmra.mxu0 %v215
    %v731 = vpop.f32.mrf.mxu0
    %v732 = vadd.f32 0.0, %v731
    %733 = vdwg.mxu0
    %v734 = vadd.f32 %v713, %v732
    %v735 = vtanh.pop %v734
    %v736 = vadd.f32 %v735, 1.0
    %v737 = vmul.f32 %v736, 0.5
    %v738 = vmul.f32 %v737, 0.0
    %740 = vrot.lane.b32.xlu0 %v735, 32
    %v741 = vpop.permute.xlu0 %740
    %v743 = vmul.f32 %v737, %v741
    %745 = vrot.lane.b32.xlu0 %v743, 32
    %v746 = vpop.permute.xlu0 %745
    %v748 = vadd.f32 %v738, %v746
    %v749 = vtanh.pop %v748
    %751 = vrot.lane.b32.xlu0 %v749, 32
    %v752 = vpop.permute.xlu0 %751
    %v754 = vmul.f32 %v737, %v752
    %v755 = vld [vmem:[%s263] sm:$0xff]
    %757 = vrot.lane.b32.xlu0 %v754, 64
    %v758 = vpop.permute.xlu0 %757
    %v759 = vsel %vm213, %v758, 0
    %761 = vmatpush.msra.mxu0 0.0
    %762 = vmatpush.msra.mxu0 0.0
    %763 = vmatpush.msra.mxu0 0.0
    %764 = vmatpush.msra.mxu0 0.0
    %765 = vmatpush.msra.mxu0 0.0
    %766 = vmatpush.msra.mxu0 0.0
    %767 = vmatpush.msra.mxu0 0.0
    %768 = vmatpush.msra.mxu0 0.0
    %769 = vmatpush.msra.mxu0 0.0
    %770 = vmatpush.msra.mxu0 0.0
    %771 = vmatpush.msra.mxu0 0.0
    %772 = vmatpush.msra.mxu0 0.0
    %773 = vmatpush.msra.mxu0 %v627
    %774 = vmatpush.msra.mxu0 %v626
    %775 = vmatpush.msra.mxu0 %v625
    %776 = vmatpush.msra.mxu0 %v624
    %777 = vmatmul.f32.gmra.mxu0 %v759
    %v778 = vpop.f32.mrf.mxu0
    %v779 = vadd.f32 0.0, %v778
    %780 = vdwg.mxu0
    %v781 = vadd.f32 %v755, %v779
    %v782 = vtanh.pop %v781
    %v783 = vadd.f32 %v782, 1.0
    %v784 = vmul.f32 %v783, 0.5
    %v785 = vmul.f32 %v784, %v748
    %787 = vrot.lane.b32.xlu0 %v782, 32
    %v788 = vpop.permute.xlu0 %787
    %v790 = vmul.f32 %v784, %v788
    %792 = vrot.lane.b32.xlu0 %v790, 32
    %v793 = vpop.permute.xlu0 %792
    %v795 = vadd.f32 %v785, %v793
    %v796 = vtanh.pop %v795
    %798 = vrot.lane.b32.xlu0 %v796, 32
    %v799 = vpop.permute.xlu0 %798
    %v801 = vmul.f32 %v784, %v799
    %v802 = vld [vmem:[%s314] sm:$0xff]
    %804 = vrot.lane.b32.xlu0 %v801, 64
    %v805 = vpop.permute.xlu0 %804
    %v806 = vsel %vm213, %v805, 0
    %808 = vmatpush.msra.mxu0 0.0
    %809 = vmatpush.msra.mxu0 0.0
    %810 = vmatpush.msra.mxu0 0.0
    %811 = vmatpush.msra.mxu0 0.0
    %812 = vmatpush.msra.mxu0 0.0
    %813 = vmatpush.msra.mxu0 0.0
    %814 = vmatpush.msra.mxu0 0.0
    %815 = vmatpush.msra.mxu0 0.0
    %816 = vmatpush.msra.mxu0 0.0
    %817 = vmatpush.msra.mxu0 0.0
    %818 = vmatpush.msra.mxu0 0.0
    %819 = vmatpush.msra.mxu0 0.0
    %820 = vmatpush.msra.mxu0 %v627
    %821 = vmatpush.msra.mxu0 %v626
    %822 = vmatpush.msra.mxu0 %v625
    %823 = vmatpush.msra.mxu0 %v624
    %824 = vmatmul.f32.gmra.mxu0 %v806
    %v825 = vpop.f32.mrf.mxu0
    %v826 = vadd.f32 0.0, %v825
    %827 = vdwg.mxu0
    %v828 = vadd.f32 %v802, %v826
    %v829 = vtanh.pop %v828
    %v830 = vadd.f32 %v829, 1.0
    %v831 = vmul.f32 %v830, 0.5
    %v832 = vmul.f32 %v831, %v795
    %834 = vrot.lane.b32.xlu0 %v829, 32
    %v835 = vpop.permute.xlu0 %834
    %v837 = vmul.f32 %v831, %v835
    %839 = vrot.lane.b32.xlu0 %v837, 32
    %v840 = vpop.permute.xlu0 %839
    %v842 = vadd.f32 %v832, %v840
    %v843 = vtanh.pop %v842
    %845 = vrot.lane.b32.xlu0 %v843, 32
    %v846 = vpop.permute.xlu0 %845
    %v848 = vmul.f32 %v831, %v846
    %v849 = vld [vmem:[%s365] sm:$0xff]
    %851 = vrot.lane.b32.xlu0 %v848, 64
    %v852 = vpop.permute.xlu0 %851
    %v853 = vsel %vm213, %v852, 0
    %855 = vmatpush.msra.mxu0 0.0
    %856 = vmatpush.msra.mxu0 0.0
    %857 = vmatpush.msra.mxu0 0.0
    %858 = vmatpush.msra.mxu0 0.0
    %859 = vmatpush.msra.mxu0 0.0
    %860 = vmatpush.msra.mxu0 0.0
    %861 = vmatpush.msra.mxu0 0.0
    %862 = vmatpush.msra.mxu0 0.0
    %863 = vmatpush.msra.mxu0 0.0
    %864 = vmatpush.msra.mxu0 0.0
    %865 = vmatpush.msra.mxu0 0.0
    %866 = vmatpush.msra.mxu0 0.0
    %867 = vmatpush.msra.mxu0 %v627
    %868 = vmatpush.msra.mxu0 %v626
    %869 = vmatpush.msra.mxu0 %v625
    %870 = vmatpush.msra.mxu0 %v624
    %871 = vmatmul.f32.gmra.mxu0 %v853
    %v872 = vpop.f32.mrf.mxu0
    %v873 = vadd.f32 0.0, %v872
    %874 = vdwg.mxu0
    %v875 = vadd.f32 %v849, %v873
    %v876 = vtanh.pop %v875
    %v877 = vadd.f32 %v876, 1.0
    %v878 = vmul.f32 %v877, 0.5
    %v879 = vmul.f32 %v878, %v842
    %881 = vrot.lane.b32.xlu0 %v876, 32
    %v882 = vpop.permute.xlu0 %881
    %v884 = vmul.f32 %v878, %v882
    %886 = vrot.lane.b32.xlu0 %v884, 32
    %v887 = vpop.permute.xlu0 %886
    %v889 = vadd.f32 %v879, %v887
    %v890 = vtanh.pop %v889
    %892 = vrot.lane.b32.xlu0 %v890, 32
    %v893 = vpop.permute.xlu0 %892
    %v895 = vmul.f32 %v878, %v893
    %v896 = vld [vmem:[%s416] sm:$0xff]
    %898 = vrot.lane.b32.xlu0 %v895, 64
    %v899 = vpop.permute.xlu0 %898
    %v900 = vsel %vm213, %v899, 0
    %902 = vmatpush.msra.mxu0 0.0
    %903 = vmatpush.msra.mxu0 0.0
    %904 = vmatpush.msra.mxu0 0.0
    %905 = vmatpush.msra.mxu0 0.0
    %906 = vmatpush.msra.mxu0 0.0
    %907 = vmatpush.msra.mxu0 0.0
    %908 = vmatpush.msra.mxu0 0.0
    %909 = vmatpush.msra.mxu0 0.0
    %910 = vmatpush.msra.mxu0 0.0
    %911 = vmatpush.msra.mxu0 0.0
    %912 = vmatpush.msra.mxu0 0.0
    %913 = vmatpush.msra.mxu0 0.0
    %914 = vmatpush.msra.mxu0 %v627
    %915 = vmatpush.msra.mxu0 %v626
    %916 = vmatpush.msra.mxu0 %v625
    %917 = vmatpush.msra.mxu0 %v624
    %918 = vmatmul.f32.gmra.mxu0 %v900
    %v919 = vpop.f32.mrf.mxu0
    %v920 = vadd.f32 0.0, %v919
    %921 = vdwg.mxu0
    %v922 = vadd.f32 %v896, %v920
    %v923 = vtanh.pop %v922
    %v924 = vadd.f32 %v923, 1.0
    %v925 = vmul.f32 %v924, 0.5
    %v926 = vmul.f32 %v925, %v889
    %928 = vrot.lane.b32.xlu0 %v923, 32
    %v929 = vpop.permute.xlu0 %928
    %v931 = vmul.f32 %v925, %v929
    %933 = vrot.lane.b32.xlu0 %v931, 32
    %v934 = vpop.permute.xlu0 %933
    %v936 = vadd.f32 %v926, %v934
    %v937 = vtanh.pop %v936
    %939 = vrot.lane.b32.xlu0 %v937, 32
    %v940 = vpop.permute.xlu0 %939
    %v942 = vmul.f32 %v925, %v940
    %v943 = vld [vmem:[%s467] sm:$0xff]
    %945 = vrot.lane.b32.xlu0 %v942, 64
    %v946 = vpop.permute.xlu0 %945
    %v947 = vsel %vm213, %v946, 0
    %949 = vmatpush.msra.mxu0 0.0
    %950 = vmatpush.msra.mxu0 0.0
    %951 = vmatpush.msra.mxu0 0.0
    %952 = vmatpush.msra.mxu0 0.0
    %953 = vmatpush.msra.mxu0 0.0
    %954 = vmatpush.msra.mxu0 0.0
    %955 = vmatpush.msra.mxu0 0.0
    %956 = vmatpush.msra.mxu0 0.0
    %957 = vmatpush.msra.mxu0 0.0
    %958 = vmatpush.msra.mxu0 0.0
    %959 = vmatpush.msra.mxu0 0.0
    %960 = vmatpush.msra.mxu0 0.0
    %961 = vmatpush.msra.mxu0 %v627
    %962 = vmatpush.msra.mxu0 %v626
    %963 = vmatpush.msra.mxu0 %v625
    %964 = vmatpush.msra.mxu0 %v624
    %965 = vmatmul.f32.gmra.mxu0 %v947
    %v966 = vpop.f32.mrf.mxu0
    %v967 = vadd.f32 0.0, %v966
    %968 = vdwg.mxu0
    %v969 = vadd.f32 %v943, %v967
    %v970 = vtanh.pop %v969
    %v971 = vadd.f32 %v970, 1.0
    %v972 = vmul.f32 %v971, 0.5
    %v973 = vmul.f32 %v972, %v936
    %975 = vrot.lane.b32.xlu0 %v970, 32
    %v976 = vpop.permute.xlu0 %975
    %v978 = vmul.f32 %v972, %v976
    %980 = vrot.lane.b32.xlu0 %v978, 32
    %v981 = vpop.permute.xlu0 %980
    %v983 = vadd.f32 %v973, %v981
    %v984 = vtanh.pop %v983
    %986 = vrot.lane.b32.xlu0 %v984, 32
    %v987 = vpop.permute.xlu0 %986
    %v989 = vmul.f32 %v972, %v987
    %v990 = vld [vmem:[%s518] sm:$0xff]
    %992 = vrot.lane.b32.xlu0 %v989, 64
    %v993 = vpop.permute.xlu0 %992
    %v994 = vsel %vm213, %v993, 0
    %996 = vmatpush.msra.mxu0 0.0
    %997 = vmatpush.msra.mxu0 0.0
    %998 = vmatpush.msra.mxu0 0.0
    %999 = vmatpush.msra.mxu0 0.0
    %1000 = vmatpush.msra.mxu0 0.0
    %1001 = vmatpush.msra.mxu0 0.0
    %1002 = vmatpush.msra.mxu0 0.0
    %1003 = vmatpush.msra.mxu0 0.0
    %1004 = vmatpush.msra.mxu0 0.0
    %1005 = vmatpush.msra.mxu0 0.0
    %1006 = vmatpush.msra.mxu0 0.0
    %1007 = vmatpush.msra.mxu0 0.0
    %1008 = vmatpush.msra.mxu0 %v627
    %1009 = vmatpush.msra.mxu0 %v626
    %1010 = vmatpush.msra.mxu0 %v625
    %1011 = vmatpush.msra.mxu0 %v624
    %1012 = vmatmul.f32.gmra.mxu0 %v994
    %v1013 = vpop.f32.mrf.mxu0
    %v1014 = vadd.f32 0.0, %v1013
    %1015 = vdwg.mxu0
    %v1016 = vadd.f32 %v990, %v1014
    %v1017 = vtanh.pop %v1016
    %v1018 = vadd.f32 %v1017, 1.0
    %v1019 = vmul.f32 %v1018, 0.5
    %v1020 = vmul.f32 %v1019, %v983
    %1022 = vrot.lane.b32.xlu0 %v1017, 32
    %v1023 = vpop.permute.xlu0 %1022
    %v1025 = vmul.f32 %v1019, %v1023
    %1027 = vrot.lane.b32.xlu0 %v1025, 32
    %v1028 = vpop.permute.xlu0 %1027
    %v1030 = vadd.f32 %v1020, %v1028
    %v1031 = vtanh.pop %v1030
    %1033 = vrot.lane.b32.xlu0 %v1031, 32
    %v1034 = vpop.permute.xlu0 %1033
    %v1036 = vmul.f32 %v1019, %v1034
    %v1037 = vld [vmem:[%s569] sm:$0xff]
    %1039 = vrot.lane.b32.xlu0 %v1036, 64
    %v1040 = vpop.permute.xlu0 %1039
    %v1041 = vsel %vm213, %v1040, 0
    %1043 = vmatpush.msra.mxu0 0.0
    %1044 = vmatpush.msra.mxu0 0.0
    %1045 = vmatpush.msra.mxu0 0.0
    %1046 = vmatpush.msra.mxu0 0.0
    %1047 = vmatpush.msra.mxu0 0.0
    %1048 = vmatpush.msra.mxu0 0.0
    %1049 = vmatpush.msra.mxu0 0.0
    %1050 = vmatpush.msra.mxu0 0.0
    %1051 = vmatpush.msra.mxu0 0.0
    %1052 = vmatpush.msra.mxu0 0.0
    %1053 = vmatpush.msra.mxu0 0.0
    %1054 = vmatpush.msra.mxu0 0.0
    %1055 = vmatpush.msra.mxu0 %v627
    %1056 = vmatpush.msra.mxu0 %v626
    %1057 = vmatpush.msra.mxu0 %v625
    %1058 = vmatpush.msra.mxu0 %v624
    %1059 = vmatmul.f32.gmra.mxu0 %v1041
    %v1060 = vpop.f32.mrf.mxu0
    %v1061 = vadd.f32 0.0, %v1060
    %1062 = vdwg.mxu0
    %v1063 = vadd.f32 %v1037, %v1061
    %v1064 = vtanh.pop %v1063
    %v1065 = vadd.f32 %v1064, 1.0
    %v1066 = vmul.f32 %v1065, 0.5
    %v1067 = vmul.f32 %v1066, %v1030
    %1069 = vrot.lane.b32.xlu0 %v1064, 32
    %v1070 = vpop.permute.xlu0 %1069
    %v1072 = vmul.f32 %v1066, %v1070
    %1074 = vrot.lane.b32.xlu0 %v1072, 32
    %v1075 = vpop.permute.xlu0 %1074
    %v1077 = vadd.f32 %v1067, %v1075
    %v1078 = vtanh.pop %v1077
    %1080 = vrot.lane.b32.xlu0 %v1078, 32
    %v1081 = vpop.permute.xlu0 %1080
    %v1083 = vmul.f32 %v1066, %v1081
    %v1084 = vld [vmem:[#allocation5] sm:$0xff]
    %v1085 = vld [vmem:[#allocation12] sm:$0xff]
    %v1086 = vld [vmem:[#allocation12 + $0x8] sm:$0xff]
    %v1087 = vld [vmem:[#allocation12 + $0x10] sm:$0xff]
    %v1088 = vld [vmem:[#allocation12 + $0x18] sm:$0xff]
    %v1089 = vld [vmem:[%s9] sm:$0xff]
    %vm1090 = vcmask 64512
    %v1092 = vsel %vm1090, %v1084, 0
    %1094 = vmatpush.msra.mxu0 0.0
    %1095 = vmatpush.msra.mxu0 0.0
    %1096 = vmatpush.msra.mxu0 0.0
    %1097 = vmatpush.msra.mxu0 0.0
    %1098 = vmatpush.msra.mxu0 0.0
    %1099 = vmatpush.msra.mxu0 0.0
    %1100 = vmatpush.msra.mxu0 0.0
    %1101 = vmatpush.msra.mxu0 0.0
    %1102 = vmatpush.msra.mxu0 0.0
    %1103 = vmatpush.msra.mxu0 0.0
    %1104 = vmatpush.msra.mxu0 0.0
    %1105 = vmatpush.msra.mxu0 0.0
    %1106 = vmatpush.msra.mxu0 0.0
    %1107 = vmatpush.msra.mxu0 0.0
    %1108 = vmatpush.msra.mxu0 0.0
    %1109 = vmatpush.msra.mxu0 %v1089
    %1110 = vmatmul.f32.gmra.mxu0 %v1092
    %v1111 = vpop.f32.mrf.mxu0
    %v1112 = vadd.f32 0.0, %v1111
    %1113 = vdwg.mxu0
    %1115 = vrot.lane.b32.xlu0 %v1083, 64
    %v1116 = vpop.permute.xlu0 %1115
    %v1117 = vsel %vm213, %v1116, 0
    %1119 = vmatpush.msra.mxu0 0.0
    %1120 = vmatpush.msra.mxu0 0.0
    %1121 = vmatpush.msra.mxu0 0.0
    %1122 = vmatpush.msra.mxu0 0.0
    %1123 = vmatpush.msra.mxu0 0.0
    %1124 = vmatpush.msra.mxu0 0.0
    %1125 = vmatpush.msra.mxu0 0.0
    %1126 = vmatpush.msra.mxu0 0.0
    %1127 = vmatpush.msra.mxu0 0.0
    %1128 = vmatpush.msra.mxu0 0.0
    %1129 = vmatpush.msra.mxu0 0.0
    %1130 = vmatpush.msra.mxu0 0.0
    %1131 = vmatpush.msra.mxu0 %v1088
    %1132 = vmatpush.msra.mxu0 %v1087
    %1133 = vmatpush.msra.mxu0 %v1086
    %1134 = vmatpush.msra.mxu0 %v1085
    %1135 = vmatmul.f32.gmra.mxu0 %v1117
    %v1136 = vpop.f32.mrf.mxu0
    %v1137 = vadd.f32 %v1112, %v1136
    %1138 = vdwg.mxu0
    %v1139 = vld [vmem:[%s10] sm:$0x1]
    %v1141 = vperm.slane %v1139, 0
    %v1143 = vadd.f32 %v1137, %v1141
    %v1144 = vmax.f32 %v1143, 0.0
    %v1145 = vld [vmem:[%s11] sm:$0xff]
    %v1146 = vld [vmem:[%s11 + $0x8] sm:$0xff]
    %v1147 = vld [vmem:[%s11 + $0x10] sm:$0xff]
    %v1148 = vld [vmem:[%s11 + $0x18] sm:$0xff]
    %v1149 = vld [vmem:[%s11 + $0x20] sm:$0xff]
    %v1150 = vld [vmem:[%s11 + $0x28] sm:$0xff]
    %v1151 = vld [vmem:[%s11 + $0x30] sm:$0xff]
    %v1152 = vld [vmem:[%s11 + $0x38] sm:$0xff]
    %v1153 = vld [vmem:[%s11 + $0x40] sm:$0xff]
    %v1154 = vld [vmem:[%s11 + $0x48] sm:$0xff]
    %v1155 = vld [vmem:[%s11 + $0x50] sm:$0xff]
    %v1156 = vld [vmem:[%s11 + $0x58] sm:$0xff]
    %v1157 = vld [vmem:[%s11 + $0x60] sm:$0xff]
    %v1158 = vld [vmem:[%s11 + $0x68] sm:$0xff]
    %v1159 = vld [vmem:[%s11 + $0x70] sm:$0xff]
    %v1160 = vld [vmem:[%s11 + $0x78] sm:$0xff]
    %v1161 = vld [vmem:[#allocation4] sm:$0x1]
    %v1163 = vperm.slane %v1161, 0
    %1165 = vmatpush.msra.mxu0 %v1160
    %1166 = vmatpush.msra.mxu0 %v1159
    %1167 = vmatpush.msra.mxu0 %v1158
    %1168 = vmatpush.msra.mxu0 %v1157
    %1169 = vmatpush.msra.mxu0 %v1156
    %1170 = vmatpush.msra.mxu0 %v1155
    %1171 = vmatpush.msra.mxu0 %v1154
    %1172 = vmatpush.msra.mxu0 %v1153
    %1173 = vmatpush.msra.mxu0 %v1152
    %1174 = vmatpush.msra.mxu0 %v1151
    %1175 = vmatpush.msra.mxu0 %v1150
    %1176 = vmatpush.msra.mxu0 %v1149
    %1177 = vmatpush.msra.mxu0 %v1148
    %1178 = vmatpush.msra.mxu0 %v1147
    %1179 = vmatpush.msra.mxu0 %v1146
    %1180 = vmatpush.msra.mxu0 %v1145
    %1181 = vmatmul.f32.gmra.mxu0 %v1144
    %v1182 = vpop.f32.mrf.mxu0
    %v1183 = vadd.f32 %v1163, %v1182
    %1184 = vdwg.mxu0
    %vm1185 = vcmask 7168
    %1186 = vst.msk [vmem:[%s13] sm:$0xff] %vm1185, %v1183
    // Predicated region
    $region74: #{tpu_custom_call.1} parent=1 // pred_check
      _
    $region75: #{tpu_custom_call.1} parent=1 // pred_check_branch
      %1188 = sbr.rel (0) target = $region77
    $region76: #{tpu_custom_call.1} parent=1 // pred_region
      _
    $region77: #{tpu_custom_call.1} parent=1 // pred_fallthru
      _
    // Predicated region
    $region78: #{tpu_custom_call.1} parent=1 // pred_check
      _
    $region79: #{tpu_custom_call.1} parent=1 // pred_check_branch
      %1190 = sbr.rel (0) target = $region81
    $region80: #{tpu_custom_call.1} parent=1 // pred_region
      _
    $region81: #{tpu_custom_call.1} parent=1 // pred_fallthru
      _
    %1191 = vsyncpa [#allocation6], 1
    %1192 = vsyncpa [#allocation8], 1
    %1193 = vsyncpa [#allocation11], 1

</llo_original>
